<compile_context>
chip_gen: v5e
topology: v5e:2x2
jax: 0.10.0
libtpu: 0.0.40
codegen_flags: <defaults>
</compile_context>

<pallas_src>
import functools

import jax
import jax.numpy as jnp
from jax.experimental import pallas as pl
from jax.experimental.pallas import tpu as pltpu


# -----------------------------------------------------------------------------
# Kernel
# -----------------------------------------------------------------------------
def _eegnet_kernel(
    xim_ref, w1sp_ref, bias_ref, pool1p_ref, w2_ref, pool2_ref,
    wfc_ref, gsum_ref, bfc_ref,
    out_ref, z_ref,
    *, K2, T2, T3, nClass):
  # --- block1: temporal conv + BN1 + depthwise spatial conv + BN2, folded
  # into one block-diagonal MXU matmul against the wrapper-built im2col.
  h = jnp.dot(w1sp_ref[...], xim_ref[0],
              preferred_element_type=jnp.float32)           # (R, T_conv)
  h = h + bias_ref[:, 0:1]
  h = jnp.where(h > 0, h, jnp.exp(jnp.minimum(h, 0.0)) - 1.0)     # ELU
  # AvgPool2d((1, 8)) with block2's zero padding folded into the pool matrix:
  # hp leaves the MXU already padded -> no scratch store/reload round trip.
  hp = jnp.dot(h, pool1p_ref[...],
               preferred_element_type=jnp.float32)          # (R, T1 + 2*pad2)

  # --- block2: depthwise temporal conv (1, K2) folded with the pointwise 1x1
  # conv and BN3 scale: h4 = sum_k W2[k] @ hp[:, k:k+T2].  All multiply-
  # accumulate runs on the MXU; accumulator initialized from the k == 0 term.
  h4 = jnp.dot(w2_ref[0], hp[:, 0:T2], preferred_element_type=jnp.float32)
  for k in range(1, K2):
    h4 = h4 + jnp.dot(w2_ref[k], hp[:, k:k + T2],
                      preferred_element_type=jnp.float32)
  h4 = h4 + bias_ref[:, 1:2]
  h4 = jnp.where(h4 > 0, h4, jnp.exp(jnp.minimum(h4, 0.0)) - 1.0)   # ELU
  # AvgPool2d((1, 16)) as MXU matmul (floor semantics baked into pool2)
  h4p = jnp.dot(h4, pool2_ref[...],
                preferred_element_type=jnp.float32)         # (R, T3)

  # Z = firstBlocks output, stored transposed (T3, R) so the writeback is
  # lane-dense (unmasked vst); the wrapper transposes back to (B, F2, 1, T3).
  z_ref[0] = h4p.T.astype(z_ref.dtype)

  # --- lastLayer: Conv2d(F2, nClass, (1, T3)) + bias == per-sample linear.
  # Tiny per-row FMA over T3 (init from t == 0 term), then one group-sum MXU
  # matmul reduces each group of F2 rows down to its batch element.
  wfc = wfc_ref[...]
  c = h4p[:, 0:1] * wfc[:, 0:nClass]
  for t in range(1, T3):
    c = c + h4p[:, t:t + 1] * wfc[:, t * nClass:(t + 1) * nClass]
  logits = jnp.dot(gsum_ref[...], c,
                   preferred_element_type=jnp.float32) + bfc_ref[...]   # (TB, nClass)

  # LogSoftmax(dim=1)
  m = jnp.max(logits, axis=-1, keepdims=True)
  s = logits - m
  lse = jnp.log(jnp.sum(jnp.exp(s), axis=-1, keepdims=True))
  out_ref[0] = (s - lse).astype(out_ref.dtype)


# -----------------------------------------------------------------------------
# Glue / parameter preparation
# -----------------------------------------------------------------------------
def _pool_matrix(t_in, k, pad=0):
  """(t_in, pad + t_in//k + pad) average-pool matrix, floor semantics, with
  `pad` zero columns on each side (folds downstream zero-padding in)."""
  t_out = t_in // k
  i = jnp.arange(t_in)[:, None]
  j = jnp.arange(t_out)[None, :]
  m = ((i // k) == j).astype(jnp.float32) / float(k)
  if pad:
    m = jnp.pad(m, ((0, 0), (pad, pad)))
  return m


def _renorm_dim0(w, maxnorm=1.0):
  """torch.renorm(w, p=2, dim=0, maxnorm) equivalent."""
  flat = w.reshape(w.shape[0], -1)
  norms = jnp.sqrt(jnp.sum(flat * flat, axis=1, keepdims=True))
  scale = jnp.where(norms > maxnorm, maxnorm / norms, 1.0)
  return (flat * scale).reshape(w.shape)


def _bn_scale_shift(key, c, eps=1e-3):
  """Random inference-mode BatchNorm folded into per-channel scale/shift."""
  k1, k2, k3, k4 = jax.random.split(key, 4)
  gamma = 0.5 + jax.random.uniform(k1, (c,), jnp.float32)
  beta = 0.1 * jax.random.normal(k2, (c,), jnp.float32)
  running_mean = 0.1 * jax.random.normal(k3, (c,), jnp.float32)
  running_var = 0.5 + jax.random.uniform(k4, (c,), jnp.float32)
  scale = gamma / jnp.sqrt(running_var + eps)
  shift = beta - running_mean * scale
  return scale, shift                                   # each (c,)


def init_params(key, nChan, nTime, nClass=4, F1=8, D=2, C1=9):
  F2 = F1 * D
  K2, pad2 = 16, 8
  T_conv = nTime + 2 * (C1 // 2) - C1 + 1
  T1 = T_conv // 8
  T2 = T1 + 2 * pad2 - K2 + 1
  T3 = T2 // 16                                         # == fSize[1]

  ks = jax.random.split(key, 9)
  w1 = 0.3 * jax.random.normal(ks[0], (F1, C1), jnp.float32)
  bn1s, bn1b = _bn_scale_shift(ks[1], F1)
  wdw = _renorm_dim0(0.3 * jax.random.normal(ks[2], (F2, nChan), jnp.float32), 1.0)
  bn2s, bn2b = _bn_scale_shift(ks[3], F2)
  wdt = 0.3 * jax.random.normal(ks[4], (F2, K2), jnp.float32)
  wpw = 0.3 * jax.random.normal(ks[5], (F2, F2), jnp.float32)
  bn3s, bn3b = _bn_scale_shift(ks[6], F2)
  wfc = 0.3 * jax.random.normal(ks[7], (nClass, F2, T3), jnp.float32)
  bfc = 0.1 * jax.random.normal(ks[8], (nClass,), jnp.float32)

  params = dict(w1=w1, bn1s=bn1s, bn1b=bn1b, wdw=wdw, bn2s=bn2s, bn2b=bn2b,
                wdt=wdt, wpw=wpw, bn3s=bn3s, bn3b=bn3b, wfc=wfc, bfc=bfc)
  dims = dict(F1=F1, D=D, F2=F2, nChan=nChan, nTime=nTime, C1=C1, K2=K2,
              pad2=pad2, T_conv=T_conv, T1=T1, T2=T2, T3=T3, nClass=nClass)
  return params, dims


def _pack_params(p, d, TB):
  """Fold all BN scales into the conv weights and build batch-blocked layouts."""
  F2, D, nChan, C1 = d["F2"], d["D"], d["nChan"], d["C1"]
  K2, T3, nClass = d["K2"], d["T3"], d["nClass"]

  g = jnp.arange(F2) // D                               # output -> F1 group
  wdw_eff = p["bn2s"][:, None] * p["wdw"]               # (F2, nChan)  bn2 folded
  w1_eff = p["bn1s"][g][:, None] * p["w1"][g]           # (F2, C1)     bn1 folded
  bias1 = p["bn1b"][g] * jnp.sum(wdw_eff, axis=1) + p["bn2b"]   # (F2,)
  wpw_eff = p["bn3s"][:, None] * p["wpw"]               # (F2, F2)     bn3 folded
  bias2 = p["bn3b"]                                     # (F2,)

  # block1 combined weight: W1SP[o, c*C1 + k] = wdw_eff[o, c] * w1_eff[o, k]
  w1sp = (wdw_eff[:, :, None] * w1_eff[:, None, :]).reshape(F2, nChan * C1)
  # block2 folded weight per tap k: W2[k, p, o] = wpw_eff[p, o] * wdt[o, k]
  w2 = wpw_eff[None, :, :] * jnp.transpose(p["wdt"])[:, None, :]   # (K2, F2, F2)

  eye = jnp.eye(TB, dtype=jnp.float32)
  w2_bd = jnp.einsum("ab,kpq->kapbq", eye, w2).reshape(K2, TB * F2, TB * F2)
  wfc_rows = jnp.transpose(p["wfc"], (1, 2, 0)).reshape(F2, T3 * nClass)
  return dict(
      w1sp_bd=jnp.kron(eye, w1sp),                      # (TB*F2, TB*nChan*C1)
      biases=jnp.tile(jnp.stack([bias1, bias2], axis=1), (TB, 1)),   # (TB*F2, 2)
      pool1p=_pool_matrix(d["T_conv"], 8, pad=d["pad2"]),  # (T_conv, T1+2*pad2)
      w2_bd=w2_bd,                                      # (K2, TB*F2, TB*F2)
      pool2=_pool_matrix(d["T2"], 16),                  # (T2, T3)
      wfc_rows=jnp.tile(wfc_rows, (TB, 1)),             # (TB*F2, T3*nClass)
      gsum=jnp.kron(eye, jnp.ones((1, F2), jnp.float32)),   # (TB, TB*F2)
      bfc_t=jnp.tile(p["bfc"][None, :], (TB, 1)),       # (TB, nClass)
  )


def _full_spec(arr):
  nd = arr.ndim
  return pl.BlockSpec(arr.shape, lambda i, _nd=nd: (0,) * _nd)


def eegnet_forward(x, params, dims, block_b=None):
  """x: (B, 1, nChan, nTime) float32 NCHW.  Returns (out (B, nClass), [Z])."""
  d = dims
  B = x.shape[0]
  nChan, C1, F2 = d["nChan"], d["C1"], d["F2"]
  T_conv, T3, nClass = d["T_conv"], d["T3"], d["nClass"]

  # Batch-block size.  Default min(B, 8) -> R = TB*F2 fills a 128-row MXU pass
  # (v5e geometry).  v6e/v7x: pass block_b=16 when B >= 16 (256-row pass);
  # v7x: also keep ceil(B/block_b) >= 2 so the "parallel" grid axis shards
  # across both TensorCores (VMEM is never the constraint for this kernel).
  TB = min(B, 8) if block_b is None else max(1, min(block_b, B))
  n_blk = -(-B // TB)
  B_pad = n_blk * TB

  pad1 = C1 // 2
  x2d = x[:, 0, :, :]                                   # (B, nChan, nTime)
  xp = jnp.pad(x2d, ((0, B_pad - B), (0, 0), (pad1, pad1)))   # (B_pad, nChan, Tp1)
  # Wrapper-side im2col (layout plumbing, no FLOPs): row (b*nChan + c)*C1 + k
  # holds xp[b, c, k : k+T_conv]; lanes are exactly T_conv (no lane padding).
  xim = jnp.stack([xp[:, :, k:k + T_conv] for k in range(C1)], axis=2)
  xim = xim.reshape(n_blk, TB * nChan * C1, T_conv)

  pk = _pack_params(params, d, TB)

  kernel = functools.partial(_eegnet_kernel, K2=d["K2"], T2=d["T2"], T3=T3,
                             nClass=nClass)

  out_b, z_b = pl.pallas_call(
      kernel,
      grid=(n_blk,),
      in_specs=[
          pl.BlockSpec((1, TB * nChan * C1, T_conv), lambda i: (i, 0, 0)),
          _full_spec(pk["w1sp_bd"]), _full_spec(pk["biases"]),
          _full_spec(pk["pool1p"]), _full_spec(pk["w2_bd"]),
          _full_spec(pk["pool2"]), _full_spec(pk["wfc_rows"]),
          _full_spec(pk["gsum"]), _full_spec(pk["bfc_t"]),
      ],
      out_specs=[
          pl.BlockSpec((1, TB, nClass), lambda i: (i, 0, 0)),
          pl.BlockSpec((1, T3, TB * F2), lambda i: (i, 0, 0)),
      ],
      out_shape=(
          jax.ShapeDtypeStruct((n_blk, TB, nClass), jnp.float32),
          jax.ShapeDtypeStruct((n_blk, T3, TB * F2), jnp.float32),
      ),
      compiler_params=pltpu.CompilerParams(dimension_semantics=("parallel",)),
  )(xim, pk["w1sp_bd"], pk["biases"], pk["pool1p"], pk["w2_bd"], pk["pool2"],
    pk["wfc_rows"], pk["gsum"], pk["bfc_t"])

  out = out_b.reshape(B_pad, nClass)[:B]                          # (B, nClass)
  Z = z_b.reshape(n_blk, T3, TB, F2)                              # lane-dense store
  Z = jnp.transpose(Z, (0, 2, 3, 1)).reshape(B_pad, F2, T3)[:B][:, :, None, :]
  return out, [Z]


# -----------------------------------------------------------------------------
# Pure-JAX reference (un-folded, layer-by-layer) for correctness checking
# -----------------------------------------------------------------------------
def eegnet_reference(x, p, d):
  hi = jax.lax.Precision.HIGHEST
  pad1 = d["C1"] // 2
  T_conv, T1, T2, T3 = d["T_conv"], d["T1"], d["T2"], d["T3"]
  F2, D, K2, pad2 = d["F2"], d["D"], d["K2"], d["pad2"]

  xp = jnp.pad(x[:, 0], ((0, 0), (0, 0), (pad1, pad1)))
  cols = jnp.stack([xp[:, :, k:k + T_conv] for k in range(d["C1"])], axis=-1)
  h1 = jnp.einsum("bctk,fk->bfct", cols, p["w1"], precision=hi)
  h1 = h1 * p["bn1s"][None, :, None, None] + p["bn1b"][None, :, None, None]

  g = jnp.arange(F2) // D
  h2 = jnp.einsum("boct,oc->bot", h1[:, g], p["wdw"], precision=hi)
  h2 = h2 * p["bn2s"][None, :, None] + p["bn2b"][None, :, None]
  h2 = jax.nn.elu(h2)
  h2 = h2[:, :, :T1 * 8].reshape(h2.shape[0], F2, T1, 8).mean(-1)

  h2p = jnp.pad(h2, ((0, 0), (0, 0), (pad2, pad2)))
  cols2 = jnp.stack([h2p[:, :, k:k + T2] for k in range(K2)], axis=-1)
  h3 = jnp.einsum("botk,ok->bot", cols2, p["wdt"], precision=hi)
  h4 = jnp.einsum("bot,po->bpt", h3, p["wpw"], precision=hi)
  h4 = h4 * p["bn3s"][None, :, None] + p["bn3b"][None, :, None]
  h4 = jax.nn.elu(h4)
  Z = h4[:, :, :T3 * 16].reshape(h4.shape[0], F2, T3, 16).mean(-1)

  logits = jnp.einsum("bot,not->bn", Z, p["wfc"], precision=hi) + p["bfc"][None, :]
  out = jax.nn.log_softmax(logits, axis=-1)
  return out, Z[:, :, None, :]


# -----------------------------------------------------------------------------
if __name__ == "__main__":
  nChan, nTime, nClass, F1, D, C1 = 4, 256, 4, 8, 2, 9
  B = 2

  key = jax.random.PRNGKey(0)
  kx, kp = jax.random.split(key)
  x = jax.random.normal(kx, (B, 1, nChan, nTime), dtype=jnp.float32)

  params, dims = init_params(kp, nChan, nTime, nClass=nClass, F1=F1, D=D, C1=C1)

  out, (Z,) = eegnet_forward(x, params, dims)
  out, Z = jax.block_until_ready((out, Z))

  assert out.shape == (B, nClass), out.shape
  assert Z.shape == (B, dims["F2"], 1, dims["T3"]), Z.shape
  assert bool(jnp.all(jnp.isfinite(out))) and bool(jnp.all(jnp.isfinite(Z)))

  out_ref, Z_ref = eegnet_reference(x, params, dims)
  err_out = float(jnp.max(jnp.abs(out - out_ref)))
  err_z = float(jnp.max(jnp.abs(Z - Z_ref)))
  assert err_out < 5e-3, f"logits mismatch vs reference: {err_out}"
  assert err_z < 5e-3, f"Z mismatch vs reference: {err_z}"

  print("KERNEL_OK")
</pallas_src>

<mosaic_0001>
module attributes {stable_mosaic.version = 11 : i64} {
  func.func @_eegnet_kernel(%arg0: i32, %arg1: memref<1x72x256xf32, #tpu.memory_space<vmem>>, %arg2: memref<32x72xf32, #tpu.memory_space<vmem>>, %arg3: memref<32x2xf32, #tpu.memory_space<vmem>>, %arg4: memref<256x48xf32, #tpu.memory_space<vmem>>, %arg5: memref<16x32x32xf32, #tpu.memory_space<vmem>>, %arg6: memref<33x2xf32, #tpu.memory_space<vmem>>, %arg7: memref<32x8xf32, #tpu.memory_space<vmem>>, %arg8: memref<2x32xf32, #tpu.memory_space<vmem>>, %arg9: memref<2x4xf32, #tpu.memory_space<vmem>>, %arg10: memref<1x2x4xf32, #tpu.memory_space<vmem>>, %arg11: memref<1x2x32xf32, #tpu.memory_space<vmem>>) attributes {dimension_semantics = [#tpu.dimension_semantics<parallel>], iteration_bounds = array<i64: 1>, scalar_prefetch = 0 : i64, scratch_operands = 0 : i64, tpu.core_type = #tpu.core_type<tc>, window_params = [{transform_indices = @transform_0, window_bounds = array<i64: 1, 72, 256>}, {pipeline_mode = #tpu.pipeline_mode<synchronous>, transform_indices = @transform_1, window_bounds = array<i64: 32, 72>}, {pipeline_mode = #tpu.pipeline_mode<synchronous>, transform_indices = @transform_2, window_bounds = array<i64: 32, 2>}, {pipeline_mode = #tpu.pipeline_mode<synchronous>, transform_indices = @transform_3, window_bounds = array<i64: 256, 48>}, {pipeline_mode = #tpu.pipeline_mode<synchronous>, transform_indices = @transform_4, window_bounds = array<i64: 16, 32, 32>}, {pipeline_mode = #tpu.pipeline_mode<synchronous>, transform_indices = @transform_5, window_bounds = array<i64: 33, 2>}, {pipeline_mode = #tpu.pipeline_mode<synchronous>, transform_indices = @transform_6, window_bounds = array<i64: 32, 8>}, {pipeline_mode = #tpu.pipeline_mode<synchronous>, transform_indices = @transform_7, window_bounds = array<i64: 2, 32>}, {pipeline_mode = #tpu.pipeline_mode<synchronous>, transform_indices = @transform_8, window_bounds = array<i64: 2, 4>}, {transform_indices = @transform_9, window_bounds = array<i64: 1, 2, 4>}, {transform_indices = @transform_10, window_bounds = array<i64: 1, 2, 32>}]} {
    %c0 = arith.constant 0 : index
    %c0_0 = arith.constant 0 : index
    %0 = vector.load %arg2[%c0, %c0_0] : memref<32x72xf32, #tpu.memory_space<vmem>>, vector<32x72xf32>
    %c0_1 = arith.constant 0 : index
    %c0_2 = arith.constant 0 : index
    %c0_3 = arith.constant 0 : index
    %1 = vector.load %arg1[%c0_1, %c0_2, %c0_3] : memref<1x72x256xf32, #tpu.memory_space<vmem>>, vector<1x72x256xf32>
    %2 = vector.shape_cast %1 : vector<1x72x256xf32> to vector<72x256xf32>
    %cst = arith.constant dense<0.000000e+00> : vector<32x256xf32>
    %3 = tpu.matmul %0, %2, %cst {dimension_numbers = #tpu.dot_dimension_numbers<[1], [0], [0], [1], [0, 0, 1, 1], [], []>} : vector<32x72xf32>, vector<72x256xf32>, vector<32x256xf32> -> vector<32x256xf32>
    %c0_4 = arith.constant 0 : index
    %c0_5 = arith.constant 0 : index
    %4 = vector.load %arg3[%c0_4, %c0_5] : memref<32x2xf32, #tpu.memory_space<vmem>>, vector<32x1xf32>
    %5 = vector.broadcast %4 : vector<32x1xf32> to vector<32x256xf32>
    %6 = arith.addf %3, %5 : vector<32x256xf32>
    %cst_6 = arith.constant 0.000000e+00 : f32
    %7 = vector.broadcast %cst_6 : f32 to vector<32x256xf32>
    %8 = arith.cmpf ogt, %6, %7 : vector<32x256xf32>
    %cst_7 = arith.constant 0.000000e+00 : f32
    %9 = vector.broadcast %cst_7 : f32 to vector<32x256xf32>
    %10 = arith.minimumf %6, %9 : vector<32x256xf32>
    %11 = math.exp %10 : vector<32x256xf32>
    %cst_8 = arith.constant 1.000000e+00 : f32
    %12 = vector.broadcast %cst_8 : f32 to vector<32x256xf32>
    %13 = arith.subf %11, %12 : vector<32x256xf32>
    %14 = arith.select %8, %6, %13 : vector<32x256xi1>, vector<32x256xf32>
    %c0_9 = arith.constant 0 : index
    %c0_10 = arith.constant 0 : index
    %15 = vector.load %arg4[%c0_9, %c0_10] : memref<256x48xf32, #tpu.memory_space<vmem>>, vector<256x48xf32>
    %cst_11 = arith.constant dense<0.000000e+00> : vector<32x48xf32>
    %16 = tpu.matmul %14, %15, %cst_11 {dimension_numbers = #tpu.dot_dimension_numbers<[1], [0], [0], [1], [0, 0, 1, 1], [], []>} : vector<32x256xf32>, vector<256x48xf32>, vector<32x48xf32> -> vector<32x48xf32>
    %c0_12 = arith.constant 0 : index
    %c0_13 = arith.constant 0 : index
    %c0_14 = arith.constant 0 : index
    %17 = vector.load %arg5[%c0_12, %c0_13, %c0_14] : memref<16x32x32xf32, #tpu.memory_space<vmem>>, vector<1x32x32xf32>
    %18 = vector.shape_cast %17 : vector<1x32x32xf32> to vector<32x32xf32>
    %19 = vector.extract_strided_slice %16 {offsets = [0, 0], sizes = [32, 33], strides = [1, 1]} : vector<32x48xf32> to vector<32x33xf32>
    %cst_15 = arith.constant dense<0.000000e+00> : vector<32x33xf32>
    %20 = tpu.matmul %18, %19, %cst_15 {dimension_numbers = #tpu.dot_dimension_numbers<[1], [0], [0], [1], [0, 0, 1, 1], [], []>} : vector<32x32xf32>, vector<32x33xf32>, vector<32x33xf32> -> vector<32x33xf32>
    %c1 = arith.constant 1 : index
    %c0_16 = arith.constant 0 : index
    %c0_17 = arith.constant 0 : index
    %21 = vector.load %arg5[%c1, %c0_16, %c0_17] : memref<16x32x32xf32, #tpu.memory_space<vmem>>, vector<1x32x32xf32>
    %22 = vector.shape_cast %21 : vector<1x32x32xf32> to vector<32x32xf32>
    %23 = vector.extract_strided_slice %16 {offsets = [0, 1], sizes = [32, 33], strides = [1, 1]} : vector<32x48xf32> to vector<32x33xf32>
    %cst_18 = arith.constant dense<0.000000e+00> : vector<32x33xf32>
    %24 = tpu.matmul %22, %23, %cst_18 {dimension_numbers = #tpu.dot_dimension_numbers<[1], [0], [0], [1], [0, 0, 1, 1], [], []>} : vector<32x32xf32>, vector<32x33xf32>, vector<32x33xf32> -> vector<32x33xf32>
    %25 = arith.addf %20, %24 : vector<32x33xf32>
    %c2 = arith.constant 2 : index
    %c0_19 = arith.constant 0 : index
    %c0_20 = arith.constant 0 : index
    %26 = vector.load %arg5[%c2, %c0_19, %c0_20] : memref<16x32x32xf32, #tpu.memory_space<vmem>>, vector<1x32x32xf32>
    %27 = vector.shape_cast %26 : vector<1x32x32xf32> to vector<32x32xf32>
    %28 = vector.extract_strided_slice %16 {offsets = [0, 2], sizes = [32, 33], strides = [1, 1]} : vector<32x48xf32> to vector<32x33xf32>
    %cst_21 = arith.constant dense<0.000000e+00> : vector<32x33xf32>
    %29 = tpu.matmul %27, %28, %cst_21 {dimension_numbers = #tpu.dot_dimension_numbers<[1], [0], [0], [1], [0, 0, 1, 1], [], []>} : vector<32x32xf32>, vector<32x33xf32>, vector<32x33xf32> -> vector<32x33xf32>
    %30 = arith.addf %25, %29 : vector<32x33xf32>
    %c3 = arith.constant 3 : index
    %c0_22 = arith.constant 0 : index
    %c0_23 = arith.constant 0 : index
    %31 = vector.load %arg5[%c3, %c0_22, %c0_23] : memref<16x32x32xf32, #tpu.memory_space<vmem>>, vector<1x32x32xf32>
    %32 = vector.shape_cast %31 : vector<1x32x32xf32> to vector<32x32xf32>
    %33 = vector.extract_strided_slice %16 {offsets = [0, 3], sizes = [32, 33], strides = [1, 1]} : vector<32x48xf32> to vector<32x33xf32>
    %cst_24 = arith.constant dense<0.000000e+00> : vector<32x33xf32>
    %34 = tpu.matmul %32, %33, %cst_24 {dimension_numbers = #tpu.dot_dimension_numbers<[1], [0], [0], [1], [0, 0, 1, 1], [], []>} : vector<32x32xf32>, vector<32x33xf32>, vector<32x33xf32> -> vector<32x33xf32>
    %35 = arith.addf %30, %34 : vector<32x33xf32>
    %c4 = arith.constant 4 : index
    %c0_25 = arith.constant 0 : index
    %c0_26 = arith.constant 0 : index
    %36 = vector.load %arg5[%c4, %c0_25, %c0_26] : memref<16x32x32xf32, #tpu.memory_space<vmem>>, vector<1x32x32xf32>
    %37 = vector.shape_cast %36 : vector<1x32x32xf32> to vector<32x32xf32>
    %38 = vector.extract_strided_slice %16 {offsets = [0, 4], sizes = [32, 33], strides = [1, 1]} : vector<32x48xf32> to vector<32x33xf32>
    %cst_27 = arith.constant dense<0.000000e+00> : vector<32x33xf32>
    %39 = tpu.matmul %37, %38, %cst_27 {dimension_numbers = #tpu.dot_dimension_numbers<[1], [0], [0], [1], [0, 0, 1, 1], [], []>} : vector<32x32xf32>, vector<32x33xf32>, vector<32x33xf32> -> vector<32x33xf32>
    %40 = arith.addf %35, %39 : vector<32x33xf32>
    %c5 = arith.constant 5 : index
    %c0_28 = arith.constant 0 : index
    %c0_29 = arith.constant 0 : index
    %41 = vector.load %arg5[%c5, %c0_28, %c0_29] : memref<16x32x32xf32, #tpu.memory_space<vmem>>, vector<1x32x32xf32>
    %42 = vector.shape_cast %41 : vector<1x32x32xf32> to vector<32x32xf32>
    %43 = vector.extract_strided_slice %16 {offsets = [0, 5], sizes = [32, 33], strides = [1, 1]} : vector<32x48xf32> to vector<32x33xf32>
    %cst_30 = arith.constant dense<0.000000e+00> : vector<32x33xf32>
    %44 = tpu.matmul %42, %43, %cst_30 {dimension_numbers = #tpu.dot_dimension_numbers<[1], [0], [0], [1], [0, 0, 1, 1], [], []>} : vector<32x32xf32>, vector<32x33xf32>, vector<32x33xf32> -> vector<32x33xf32>
    %45 = arith.addf %40, %44 : vector<32x33xf32>
    %c6 = arith.constant 6 : index
    %c0_31 = arith.constant 0 : index
    %c0_32 = arith.constant 0 : index
    %46 = vector.load %arg5[%c6, %c0_31, %c0_32] : memref<16x32x32xf32, #tpu.memory_space<vmem>>, vector<1x32x32xf32>
    %47 = vector.shape_cast %46 : vector<1x32x32xf32> to vector<32x32xf32>
    %48 = vector.extract_strided_slice %16 {offsets = [0, 6], sizes = [32, 33], strides = [1, 1]} : vector<32x48xf32> to vector<32x33xf32>
    %cst_33 = arith.constant dense<0.000000e+00> : vector<32x33xf32>
    %49 = tpu.matmul %47, %48, %cst_33 {dimension_numbers = #tpu.dot_dimension_numbers<[1], [0], [0], [1], [0, 0, 1, 1], [], []>} : vector<32x32xf32>, vector<32x33xf32>, vector<32x33xf32> -> vector<32x33xf32>
    %50 = arith.addf %45, %49 : vector<32x33xf32>
    %c7 = arith.constant 7 : index
    %c0_34 = arith.constant 0 : index
    %c0_35 = arith.constant 0 : index
    %51 = vector.load %arg5[%c7, %c0_34, %c0_35] : memref<16x32x32xf32, #tpu.memory_space<vmem>>, vector<1x32x32xf32>
    %52 = vector.shape_cast %51 : vector<1x32x32xf32> to vector<32x32xf32>
    %53 = vector.extract_strided_slice %16 {offsets = [0, 7], sizes = [32, 33], strides = [1, 1]} : vector<32x48xf32> to vector<32x33xf32>
    %cst_36 = arith.constant dense<0.000000e+00> : vector<32x33xf32>
    %54 = tpu.matmul %52, %53, %cst_36 {dimension_numbers = #tpu.dot_dimension_numbers<[1], [0], [0], [1], [0, 0, 1, 1], [], []>} : vector<32x32xf32>, vector<32x33xf32>, vector<32x33xf32> -> vector<32x33xf32>
    %55 = arith.addf %50, %54 : vector<32x33xf32>
    %c8 = arith.constant 8 : index
    %c0_37 = arith.constant 0 : index
    %c0_38 = arith.constant 0 : index
    %56 = vector.load %arg5[%c8, %c0_37, %c0_38] : memref<16x32x32xf32, #tpu.memory_space<vmem>>, vector<1x32x32xf32>
    %57 = vector.shape_cast %56 : vector<1x32x32xf32> to vector<32x32xf32>
    %58 = vector.extract_strided_slice %16 {offsets = [0, 8], sizes = [32, 33], strides = [1, 1]} : vector<32x48xf32> to vector<32x33xf32>
    %cst_39 = arith.constant dense<0.000000e+00> : vector<32x33xf32>
    %59 = tpu.matmul %57, %58, %cst_39 {dimension_numbers = #tpu.dot_dimension_numbers<[1], [0], [0], [1], [0, 0, 1, 1], [], []>} : vector<32x32xf32>, vector<32x33xf32>, vector<32x33xf32> -> vector<32x33xf32>
    %60 = arith.addf %55, %59 : vector<32x33xf32>
    %c9 = arith.constant 9 : index
    %c0_40 = arith.constant 0 : index
    %c0_41 = arith.constant 0 : index
    %61 = vector.load %arg5[%c9, %c0_40, %c0_41] : memref<16x32x32xf32, #tpu.memory_space<vmem>>, vector<1x32x32xf32>
    %62 = vector.shape_cast %61 : vector<1x32x32xf32> to vector<32x32xf32>
    %63 = vector.extract_strided_slice %16 {offsets = [0, 9], sizes = [32, 33], strides = [1, 1]} : vector<32x48xf32> to vector<32x33xf32>
    %cst_42 = arith.constant dense<0.000000e+00> : vector<32x33xf32>
    %64 = tpu.matmul %62, %63, %cst_42 {dimension_numbers = #tpu.dot_dimension_numbers<[1], [0], [0], [1], [0, 0, 1, 1], [], []>} : vector<32x32xf32>, vector<32x33xf32>, vector<32x33xf32> -> vector<32x33xf32>
    %65 = arith.addf %60, %64 : vector<32x33xf32>
    %c10 = arith.constant 10 : index
    %c0_43 = arith.constant 0 : index
    %c0_44 = arith.constant 0 : index
    %66 = vector.load %arg5[%c10, %c0_43, %c0_44] : memref<16x32x32xf32, #tpu.memory_space<vmem>>, vector<1x32x32xf32>
    %67 = vector.shape_cast %66 : vector<1x32x32xf32> to vector<32x32xf32>
    %68 = vector.extract_strided_slice %16 {offsets = [0, 10], sizes = [32, 33], strides = [1, 1]} : vector<32x48xf32> to vector<32x33xf32>
    %cst_45 = arith.constant dense<0.000000e+00> : vector<32x33xf32>
    %69 = tpu.matmul %67, %68, %cst_45 {dimension_numbers = #tpu.dot_dimension_numbers<[1], [0], [0], [1], [0, 0, 1, 1], [], []>} : vector<32x32xf32>, vector<32x33xf32>, vector<32x33xf32> -> vector<32x33xf32>
    %70 = arith.addf %65, %69 : vector<32x33xf32>
    %c11 = arith.constant 11 : index
    %c0_46 = arith.constant 0 : index
    %c0_47 = arith.constant 0 : index
    %71 = vector.load %arg5[%c11, %c0_46, %c0_47] : memref<16x32x32xf32, #tpu.memory_space<vmem>>, vector<1x32x32xf32>
    %72 = vector.shape_cast %71 : vector<1x32x32xf32> to vector<32x32xf32>
    %73 = vector.extract_strided_slice %16 {offsets = [0, 11], sizes = [32, 33], strides = [1, 1]} : vector<32x48xf32> to vector<32x33xf32>
    %cst_48 = arith.constant dense<0.000000e+00> : vector<32x33xf32>
    %74 = tpu.matmul %72, %73, %cst_48 {dimension_numbers = #tpu.dot_dimension_numbers<[1], [0], [0], [1], [0, 0, 1, 1], [], []>} : vector<32x32xf32>, vector<32x33xf32>, vector<32x33xf32> -> vector<32x33xf32>
    %75 = arith.addf %70, %74 : vector<32x33xf32>
    %c12 = arith.constant 12 : index
    %c0_49 = arith.constant 0 : index
    %c0_50 = arith.constant 0 : index
    %76 = vector.load %arg5[%c12, %c0_49, %c0_50] : memref<16x32x32xf32, #tpu.memory_space<vmem>>, vector<1x32x32xf32>
    %77 = vector.shape_cast %76 : vector<1x32x32xf32> to vector<32x32xf32>
    %78 = vector.extract_strided_slice %16 {offsets = [0, 12], sizes = [32, 33], strides = [1, 1]} : vector<32x48xf32> to vector<32x33xf32>
    %cst_51 = arith.constant dense<0.000000e+00> : vector<32x33xf32>
    %79 = tpu.matmul %77, %78, %cst_51 {dimension_numbers = #tpu.dot_dimension_numbers<[1], [0], [0], [1], [0, 0, 1, 1], [], []>} : vector<32x32xf32>, vector<32x33xf32>, vector<32x33xf32> -> vector<32x33xf32>
    %80 = arith.addf %75, %79 : vector<32x33xf32>
    %c13 = arith.constant 13 : index
    %c0_52 = arith.constant 0 : index
    %c0_53 = arith.constant 0 : index
    %81 = vector.load %arg5[%c13, %c0_52, %c0_53] : memref<16x32x32xf32, #tpu.memory_space<vmem>>, vector<1x32x32xf32>
    %82 = vector.shape_cast %81 : vector<1x32x32xf32> to vector<32x32xf32>
    %83 = vector.extract_strided_slice %16 {offsets = [0, 13], sizes = [32, 33], strides = [1, 1]} : vector<32x48xf32> to vector<32x33xf32>
    %cst_54 = arith.constant dense<0.000000e+00> : vector<32x33xf32>
    %84 = tpu.matmul %82, %83, %cst_54 {dimension_numbers = #tpu.dot_dimension_numbers<[1], [0], [0], [1], [0, 0, 1, 1], [], []>} : vector<32x32xf32>, vector<32x33xf32>, vector<32x33xf32> -> vector<32x33xf32>
    %85 = arith.addf %80, %84 : vector<32x33xf32>
    %c14 = arith.constant 14 : index
    %c0_55 = arith.constant 0 : index
    %c0_56 = arith.constant 0 : index
    %86 = vector.load %arg5[%c14, %c0_55, %c0_56] : memref<16x32x32xf32, #tpu.memory_space<vmem>>, vector<1x32x32xf32>
    %87 = vector.shape_cast %86 : vector<1x32x32xf32> to vector<32x32xf32>
    %88 = vector.extract_strided_slice %16 {offsets = [0, 14], sizes = [32, 33], strides = [1, 1]} : vector<32x48xf32> to vector<32x33xf32>
    %cst_57 = arith.constant dense<0.000000e+00> : vector<32x33xf32>
    %89 = tpu.matmul %87, %88, %cst_57 {dimension_numbers = #tpu.dot_dimension_numbers<[1], [0], [0], [1], [0, 0, 1, 1], [], []>} : vector<32x32xf32>, vector<32x33xf32>, vector<32x33xf32> -> vector<32x33xf32>
    %90 = arith.addf %85, %89 : vector<32x33xf32>
    %c15 = arith.constant 15 : index
    %c0_58 = arith.constant 0 : index
    %c0_59 = arith.constant 0 : index
    %91 = vector.load %arg5[%c15, %c0_58, %c0_59] : memref<16x32x32xf32, #tpu.memory_space<vmem>>, vector<1x32x32xf32>
    %92 = vector.shape_cast %91 : vector<1x32x32xf32> to vector<32x32xf32>
    %93 = vector.extract_strided_slice %16 {offsets = [0, 15], sizes = [32, 33], strides = [1, 1]} : vector<32x48xf32> to vector<32x33xf32>
    %cst_60 = arith.constant dense<0.000000e+00> : vector<32x33xf32>
    %94 = tpu.matmul %92, %93, %cst_60 {dimension_numbers = #tpu.dot_dimension_numbers<[1], [0], [0], [1], [0, 0, 1, 1], [], []>} : vector<32x32xf32>, vector<32x33xf32>, vector<32x33xf32> -> vector<32x33xf32>
    %95 = arith.addf %90, %94 : vector<32x33xf32>
    %c0_61 = arith.constant 0 : index
    %c1_62 = arith.constant 1 : index
    %96 = vector.load %arg3[%c0_61, %c1_62] : memref<32x2xf32, #tpu.memory_space<vmem>>, vector<32x1xf32>
    %97 = vector.broadcast %96 : vector<32x1xf32> to vector<32x33xf32>
    %98 = arith.addf %95, %97 : vector<32x33xf32>
    %cst_63 = arith.constant 0.000000e+00 : f32
    %99 = vector.broadcast %cst_63 : f32 to vector<32x33xf32>
    %100 = arith.cmpf ogt, %98, %99 : vector<32x33xf32>
    %cst_64 = arith.constant 0.000000e+00 : f32
    %101 = vector.broadcast %cst_64 : f32 to vector<32x33xf32>
    %102 = arith.minimumf %98, %101 : vector<32x33xf32>
    %103 = math.exp %102 : vector<32x33xf32>
    %cst_65 = arith.constant 1.000000e+00 : f32
    %104 = vector.broadcast %cst_65 : f32 to vector<32x33xf32>
    %105 = arith.subf %103, %104 : vector<32x33xf32>
    %106 = arith.select %100, %98, %105 : vector<32x33xi1>, vector<32x33xf32>
    %c0_66 = arith.constant 0 : index
    %c0_67 = arith.constant 0 : index
    %107 = vector.load %arg6[%c0_66, %c0_67] : memref<33x2xf32, #tpu.memory_space<vmem>>, vector<33x2xf32>
    %cst_68 = arith.constant dense<0.000000e+00> : vector<32x2xf32>
    %108 = tpu.matmul %106, %107, %cst_68 {dimension_numbers = #tpu.dot_dimension_numbers<[1], [0], [0], [1], [0, 0, 1, 1], [], []>} : vector<32x33xf32>, vector<33x2xf32>, vector<32x2xf32> -> vector<32x2xf32>
    %109 = tpu.transpose %108, [1, 0] : vector<32x2xf32> -> vector<2x32xf32>
    %c0_69 = arith.constant 0 : index
    %c0_70 = arith.constant 0 : index
    %c0_71 = arith.constant 0 : index
    %110 = vector.load %arg11[%c0_69, %c0_70, %c0_71] : memref<1x2x32xf32, #tpu.memory_space<vmem>>, vector<1x2x32xf32>
    %111 = vector.shape_cast %110 : vector<1x2x32xf32> to vector<2x32xf32>
    %112 = vector.shape_cast %109 : vector<2x32xf32> to vector<1x2x32xf32>
    tpu.vector_store %arg11[%c0_69, %c0_70, %c0_71], %112 {strides = array<i32>} : memref<1x2x32xf32, #tpu.memory_space<vmem>>, vector<1x2x32xf32>,
    %c0_72 = arith.constant 0 : index
    %c0_73 = arith.constant 0 : index
    %113 = vector.load %arg7[%c0_72, %c0_73] : memref<32x8xf32, #tpu.memory_space<vmem>>, vector<32x8xf32>
    %114 = vector.extract_strided_slice %108 {offsets = [0, 0], sizes = [32, 1], strides = [1, 1]} : vector<32x2xf32> to vector<32x1xf32>
    %115 = vector.extract_strided_slice %113 {offsets = [0, 0], sizes = [32, 4], strides = [1, 1]} : vector<32x8xf32> to vector<32x4xf32>
    %116 = vector.broadcast %114 : vector<32x1xf32> to vector<32x4xf32>
    %117 = arith.mulf %116, %115 : vector<32x4xf32>
    %118 = vector.extract_strided_slice %108 {offsets = [0, 1], sizes = [32, 1], strides = [1, 1]} : vector<32x2xf32> to vector<32x1xf32>
    %119 = vector.extract_strided_slice %113 {offsets = [0, 4], sizes = [32, 4], strides = [1, 1]} : vector<32x8xf32> to vector<32x4xf32>
    %120 = vector.broadcast %118 : vector<32x1xf32> to vector<32x4xf32>
    %121 = arith.mulf %120, %119 : vector<32x4xf32>
    %122 = arith.addf %117, %121 : vector<32x4xf32>
    %c0_74 = arith.constant 0 : index
    %c0_75 = arith.constant 0 : index
    %123 = vector.load %arg8[%c0_74, %c0_75] : memref<2x32xf32, #tpu.memory_space<vmem>>, vector<2x32xf32>
    %cst_76 = arith.constant dense<0.000000e+00> : vector<2x4xf32>
    %124 = tpu.matmul %123, %122, %cst_76 {dimension_numbers = #tpu.dot_dimension_numbers<[1], [0], [0], [1], [0, 0, 1, 1], [], []>} : vector<2x32xf32>, vector<32x4xf32>, vector<2x4xf32> -> vector<2x4xf32>
    %c0_77 = arith.constant 0 : index
    %c0_78 = arith.constant 0 : index
    %125 = vector.load %arg9[%c0_77, %c0_78] : memref<2x4xf32, #tpu.memory_space<vmem>>, vector<2x4xf32>
    %126 = arith.addf %124, %125 : vector<2x4xf32>
    %cst_79 = arith.constant dense<0xFF800000> : vector<2xf32>
    %127 = vector.multi_reduction <maximumf>, %126, %cst_79 [1] : vector<2x4xf32> to vector<2xf32>
    %128 = vector.shape_cast %127 : vector<2xf32> to vector<2x1xf32>
    %129 = vector.broadcast %128 : vector<2x1xf32> to vector<2x4xf32>
    %130 = arith.subf %126, %129 : vector<2x4xf32>
    %131 = math.exp %130 : vector<2x4xf32>
    %cst_80 = arith.constant dense<0.000000e+00> : vector<2xf32>
    %132 = vector.multi_reduction <add>, %131, %cst_80 [1] : vector<2x4xf32> to vector<2xf32>
    %133 = vector.shape_cast %132 : vector<2xf32> to vector<2x1xf32>
    %134 = math.log %133 : vector<2x1xf32>
    %135 = vector.broadcast %134 : vector<2x1xf32> to vector<2x4xf32>
    %136 = arith.subf %130, %135 : vector<2x4xf32>
    %c0_81 = arith.constant 0 : index
    %c0_82 = arith.constant 0 : index
    %c0_83 = arith.constant 0 : index
    %137 = vector.load %arg10[%c0_81, %c0_82, %c0_83] : memref<1x2x4xf32, #tpu.memory_space<vmem>>, vector<1x2x4xf32>
    %138 = vector.shape_cast %137 : vector<1x2x4xf32> to vector<2x4xf32>
    %139 = vector.shape_cast %136 : vector<2x4xf32> to vector<1x2x4xf32>
    tpu.vector_store %arg10[%c0_81, %c0_82, %c0_83], %139 {strides = array<i32>} : memref<1x2x4xf32, #tpu.memory_space<vmem>>, vector<1x2x4xf32>,
    return
  }
  func.func @transform_0(%arg0: i32) -> (i32, i32, i32) {
    %c0_i32 = arith.constant 0 : i32
    %c0_i32_0 = arith.constant 0 : i32
    %c0_i32_1 = arith.constant 0 : i32
    return %arg0, %c0_i32, %c0_i32_0 : i32, i32, i32
  }
  func.func @transform_1(%arg0: i32) -> (i32, i32) {
    %c0_i32 = arith.constant 0 : i32
    %c0_i32_0 = arith.constant 0 : i32
    %c0_i32_1 = arith.constant 0 : i32
    return %c0_i32, %c0_i32_0 : i32, i32
  }
  func.func @transform_2(%arg0: i32) -> (i32, i32) {
    %c0_i32 = arith.constant 0 : i32
    %c0_i32_0 = arith.constant 0 : i32
    %c0_i32_1 = arith.constant 0 : i32
    return %c0_i32, %c0_i32_0 : i32, i32
  }
  func.func @transform_3(%arg0: i32) -> (i32, i32) {
    %c0_i32 = arith.constant 0 : i32
    %c0_i32_0 = arith.constant 0 : i32
    %c0_i32_1 = arith.constant 0 : i32
    return %c0_i32, %c0_i32_0 : i32, i32
  }
  func.func @transform_4(%arg0: i32) -> (i32, i32, i32) {
    %c0_i32 = arith.constant 0 : i32
    %c0_i32_0 = arith.constant 0 : i32
    %c0_i32_1 = arith.constant 0 : i32
    %c0_i32_2 = arith.constant 0 : i32
    return %c0_i32, %c0_i32_0, %c0_i32_1 : i32, i32, i32
  }
  func.func @transform_5(%arg0: i32) -> (i32, i32) {
    %c0_i32 = arith.constant 0 : i32
    %c0_i32_0 = arith.constant 0 : i32
    %c0_i32_1 = arith.constant 0 : i32
    return %c0_i32, %c0_i32_0 : i32, i32
  }
  func.func @transform_6(%arg0: i32) -> (i32, i32) {
    %c0_i32 = arith.constant 0 : i32
    %c0_i32_0 = arith.constant 0 : i32
    %c0_i32_1 = arith.constant 0 : i32
    return %c0_i32, %c0_i32_0 : i32, i32
  }
  func.func @transform_7(%arg0: i32) -> (i32, i32) {
    %c0_i32 = arith.constant 0 : i32
    %c0_i32_0 = arith.constant 0 : i32
    %c0_i32_1 = arith.constant 0 : i32
    return %c0_i32, %c0_i32_0 : i32, i32
  }
  func.func @transform_8(%arg0: i32) -> (i32, i32) {
    %c0_i32 = arith.constant 0 : i32
    %c0_i32_0 = arith.constant 0 : i32
    %c0_i32_1 = arith.constant 0 : i32
    return %c0_i32, %c0_i32_0 : i32, i32
  }
  func.func @transform_9(%arg0: i32) -> (i32, i32, i32) {
    %c0_i32 = arith.constant 0 : i32
    %c0_i32_0 = arith.constant 0 : i32
    %c0_i32_1 = arith.constant 0 : i32
    return %arg0, %c0_i32, %c0_i32_0 : i32, i32, i32
  }
  func.func @transform_10(%arg0: i32) -> (i32, i32, i32) {
    %c0_i32 = arith.constant 0 : i32
    %c0_i32_0 = arith.constant 0 : i32
    %c0_i32_1 = arith.constant 0 : i32
    return %arg0, %c0_i32, %c0_i32_0 : i32, i32, i32
  }
}

</mosaic_0001>

<llo_original>
// kernel: tpu_custom_call.1
$region0: #{tpu_custom_call.1}
  #allocation0 [shape = 'u32[]', space=smem, size = 0x4, offset = 0x4, fixed_abs, tag = 'smem constant byte address 0x4 - core index']
  #allocation1 [shape = 'u32[72,128]{1,0:T(1,128)}', space=vmem, size = 0x9000, scoped, tag = 'internal scratch']
  %s0 = inlined_call_operand.vmem [shape: f32[1,72,256], index: 0, kind: input, shape index: {}]
  %s1 = inlined_call_operand.vmem [shape: f32[32,72], index: 1, kind: input, shape index: {}]
  %s2 = inlined_call_operand.vmem [shape: f32[32,2], index: 2, kind: input, shape index: {}]
  %s3 = inlined_call_operand.vmem [shape: f32[256,48], index: 3, kind: input, shape index: {}]
  %s4 = inlined_call_operand.hbm [shape: f32[16,32,32], index: 4, kind: input, shape index: {}]
  %s5 = inlined_call_operand.vmem [shape: f32[33,2], index: 5, kind: input, shape index: {}]
  %s6 = inlined_call_operand.vmem [shape: f32[32,8], index: 6, kind: input, shape index: {}]
  %s7 = inlined_call_operand.vmem [shape: f32[2,32], index: 7, kind: input, shape index: {}]
  %s8 = inlined_call_operand.vmem [shape: f32[2,4], index: 8, kind: input, shape index: {}]
  %s9 = inlined_call_operand.hbm [shape: f32[1,2,4], index: 9, kind: output, shape index: {0}]
  %s10 = inlined_call_operand.hbm [shape: f32[1,2,32], index: 10, kind: output, shape index: {1}]
  %11 = xla_tuple %s9, %s10
  %s12 = sld [smem:[#allocation0]]
  $region58: #{tpu_custom_call.1} parent=0
    _
  %s14 = ssub.s32 1, %s12
  %s15 = scalar_select 0, %s14, %s12
  $region1: #{tpu_custom_call.1} parent=0
    #allocation2 [shape = 'u8[262144]{0}', space=vmem, size = 0x40000, scoped, tag = 'input window, operand 4, single buffered']
    #allocation3 [shape = 's32[1]{0}', space=sflag, size = 0x4, scoped, tag = 'scoped memory for tpu_custom_call.1']
    #allocation4 [shape = 's32[1]{0}', space=sflag, size = 0x4, scoped, tag = 'scoped memory for tpu_custom_call.1']
    #allocation5 [shape = 'u8[1024]{0}', space=vmem, size = 0x400, scoped, tag = 'output window, operand 0, single buffered']
    #allocation6 [shape = 'u8[1024]{0}', space=vmem, size = 0x400, scoped, tag = 'output window, operand 1, single buffered']
    #allocation7 [shape = 's32[1]{0}', space=sflag, size = 0x4, scoped, tag = 'scoped memory for tpu_custom_call.1']
    %16 = vsyncpa [#allocation3], 0
    %17 = vsyncpa [#allocation4], 0
    %18 = vsyncpa [#allocation7], 0
    // Predicated region
    $region2: #{tpu_custom_call.1} parent=1 // pred_check
      _
    $region3: #{tpu_custom_call.1} parent=1 // pred_check_branch
      %20 = sbr.rel (0) target = $region5
    $region4: #{tpu_custom_call.1} parent=1 // pred_region
      _
    $region5: #{tpu_custom_call.1} parent=1 // pred_fallthru
      _
    // Predicated region
    $region6: #{tpu_custom_call.1} parent=1 // pred_check
      _
    $region7: #{tpu_custom_call.1} parent=1 // pred_check_branch
      %22 = sbr.rel (0) target = $region9
    $region8: #{tpu_custom_call.1} parent=1 // pred_region
      _
    $region9: #{tpu_custom_call.1} parent=1 // pred_fallthru
      _
    // Predicated region
    $region10: #{tpu_custom_call.1} parent=1 // pred_check
      _
    $region11: #{tpu_custom_call.1} parent=1 // pred_check_branch
      %24 = sbr.rel (0) target = $region13
    $region12: #{tpu_custom_call.1} parent=1 // pred_region
      _
    $region13: #{tpu_custom_call.1} parent=1 // pred_fallthru
      _
    // Predicated region
    $region14: #{tpu_custom_call.1} parent=1 // pred_check
      _
    $region15: #{tpu_custom_call.1} parent=1 // pred_check_branch
      %26 = sbr.rel (0) target = $region17
    $region16: #{tpu_custom_call.1} parent=1 // pred_region
      _
    $region17: #{tpu_custom_call.1} parent=1 // pred_fallthru
      _
    // Predicated region
    $region18: #{tpu_custom_call.1} parent=1 // pred_check
      _
    $region19: #{tpu_custom_call.1} parent=1 // pred_check_branch
      %28 = sbr.rel (0) target = $region21
    $region20: #{tpu_custom_call.1} parent=1 // pred_region
      %30 = vsyncadd [#allocation3], 0
      %s31 = sshll.u32 %s4, 4
      %s32 = int_to_ptr.hbm [resolvable:$true] %s31
      %s33 = sshll.u32 [#allocation2], 4
      %s34 = int_to_ptr.vmem [resolvable:$true] %s33
      %39 = dma.hbm_to_vmem [thread:$0]  %s32, 8192, %s34, [#allocation3], 128, 128, 8
    $region21: #{tpu_custom_call.1} parent=1 // pred_fallthru
      _
    // Predicated region
    $region22: #{tpu_custom_call.1} parent=1 // pred_check
      _
    $region23: #{tpu_custom_call.1} parent=1 // pred_check_branch
      %41 = sbr.rel (0) target = $region25
    $region24: #{tpu_custom_call.1} parent=1 // pred_region
      _
    $region25: #{tpu_custom_call.1} parent=1 // pred_fallthru
      _
    // Predicated region
    $region26: #{tpu_custom_call.1} parent=1 // pred_check
      _
    $region27: #{tpu_custom_call.1} parent=1 // pred_check_branch
      %43 = sbr.rel (0) target = $region29
    $region28: #{tpu_custom_call.1} parent=1 // pred_region
      _
    $region29: #{tpu_custom_call.1} parent=1 // pred_fallthru
      _
    // Predicated region
    $region30: #{tpu_custom_call.1} parent=1 // pred_check
      _
    $region31: #{tpu_custom_call.1} parent=1 // pred_check_branch
      %45 = sbr.rel (0) target = $region33
    $region32: #{tpu_custom_call.1} parent=1 // pred_region
      _
    $region33: #{tpu_custom_call.1} parent=1 // pred_fallthru
      _
    // Predicated region
    $region34: #{tpu_custom_call.1} parent=1 // pred_check
      _
    $region35: #{tpu_custom_call.1} parent=1 // pred_check_branch
      %47 = sbr.rel (0) target = $region37
    $region36: #{tpu_custom_call.1} parent=1 // pred_region
      _
    $region37: #{tpu_custom_call.1} parent=1 // pred_fallthru
      _
    // Predicated region
    $region38: #{tpu_custom_call.1} parent=1 // pred_check
      _
    $region39: #{tpu_custom_call.1} parent=1 // pred_check_branch
      %49 = sbr.rel (0) target = $region41
    $region40: #{tpu_custom_call.1} parent=1 // pred_region
      %51 = dma.done [#allocation3], 8192
    $region41: #{tpu_custom_call.1} parent=1 // pred_fallthru
      _
    %v52 = vld [vmem:[%s1] sm:$0xff]
    %v53 = vld [vmem:[%s1 + $0x8] sm:$0xff]
    %v54 = vld [vmem:[%s1 + $0x10] sm:$0xff]
    %v55 = vld [vmem:[%s1 + $0x18] sm:$0xff]
    %v56 = vld [vmem:[%s0] sm:$0xff]
    %v57 = vld [vmem:[%s0 + $0x8] sm:$0xff]
    %v58 = vld [vmem:[%s0 + $0x10] sm:$0xff]
    %v59 = vld [vmem:[%s0 + $0x18] sm:$0xff]
    %v60 = vld [vmem:[%s0 + $0x20] sm:$0xff]
    %v61 = vld [vmem:[%s0 + $0x28] sm:$0xff]
    %v62 = vld [vmem:[%s0 + $0x30] sm:$0xff]
    %v63 = vld [vmem:[%s0 + $0x38] sm:$0xff]
    %v64 = vld [vmem:[%s0 + $0x40] sm:$0xff]
    %v65 = vld [vmem:[%s0 + $0x48] sm:$0xff]
    %v66 = vld [vmem:[%s0 + $0x50] sm:$0xff]
    %v67 = vld [vmem:[%s0 + $0x58] sm:$0xff]
    %v68 = vld [vmem:[%s0 + $0x60] sm:$0xff]
    %v69 = vld [vmem:[%s0 + $0x68] sm:$0xff]
    %v70 = vld [vmem:[%s0 + $0x70] sm:$0xff]
    %v71 = vld [vmem:[%s0 + $0x78] sm:$0xff]
    %v72 = vld [vmem:[%s0 + $0x80] sm:$0xff]
    %v73 = vld [vmem:[%s0 + $0x88] sm:$0xff]
    %v74 = vld [vmem:[%s2] sm:$0xff]
    %v75 = vld [vmem:[%s2 + $0x8] sm:$0xff]
    %v76 = vld [vmem:[%s2 + $0x10] sm:$0xff]
    %v77 = vld [vmem:[%s2 + $0x18] sm:$0xff]
    %79 = vset.pattern.permute.xlu0 0
    %80 = vperm.xlu0 %79, %v74
    %v81 = vpop.permute.xlu0 %80
    %84 = vset.pattern.permute.xlu0 0
    %85 = vperm.xlu0 %84, %v75
    %v86 = vpop.permute.xlu0 %85
    %89 = vset.pattern.permute.xlu0 0
    %90 = vperm.xlu0 %89, %v76
    %v91 = vpop.permute.xlu0 %90
    %94 = vset.pattern.permute.xlu0 0
    %95 = vperm.xlu0 %94, %v77
    %v96 = vpop.permute.xlu0 %95
    %vm98 = vcmask 588800
    %v100 = vsel %vm98, %v52, 0
    %v103 = vsel %vm98, %v53, 0
    %v106 = vsel %vm98, %v54, 0
    %v109 = vsel %vm98, %v55, 0
    %111 = vmatpush.msra.mxu0 0.0
    %112 = vmatpush.msra.mxu0 0.0
    %113 = vmatpush.msra.mxu0 0.0
    %114 = vmatpush.msra.mxu0 0.0
    %115 = vmatpush.msra.mxu0 0.0
    %116 = vmatpush.msra.mxu0 0.0
    %117 = vmatpush.msra.mxu0 0.0
    %118 = vmatpush.msra.mxu0 %v72
    %119 = vmatpush.msra.mxu0 %v70
    %120 = vmatpush.msra.mxu0 %v68
    %121 = vmatpush.msra.mxu0 %v66
    %122 = vmatpush.msra.mxu0 %v64
    %123 = vmatpush.msra.mxu0 %v62
    %124 = vmatpush.msra.mxu0 %v60
    %125 = vmatpush.msra.mxu0 %v58
    %126 = vmatpush.msra.mxu0 %v56
    %127 = vmatmul.f32.gmra.mxu0 %v100
    %v128 = vpop.f32.mrf.mxu0
    %v129 = vadd.f32 %v81, %v128
    %130 = vmatmul.f32.gmra.mxu0 %v103
    %v131 = vpop.f32.mrf.mxu0
    %v132 = vadd.f32 %v86, %v131
    %133 = vmatmul.f32.gmra.mxu0 %v106
    %v134 = vpop.f32.mrf.mxu0
    %v135 = vadd.f32 %v91, %v134
    %136 = vmatmul.f32.gmra.mxu0 %v109
    %v137 = vpop.f32.mrf.mxu0
    %v138 = vadd.f32 %v96, %v137
    %139 = vdwg.mxu0
    %140 = vmatpush.msra.mxu0 0.0
    %141 = vmatpush.msra.mxu0 0.0
    %142 = vmatpush.msra.mxu0 0.0
    %143 = vmatpush.msra.mxu0 0.0
    %144 = vmatpush.msra.mxu0 0.0
    %145 = vmatpush.msra.mxu0 0.0
    %146 = vmatpush.msra.mxu0 0.0
    %147 = vmatpush.msra.mxu0 %v73
    %148 = vmatpush.msra.mxu0 %v71
    %149 = vmatpush.msra.mxu0 %v69
    %150 = vmatpush.msra.mxu0 %v67
    %151 = vmatpush.msra.mxu0 %v65
    %152 = vmatpush.msra.mxu0 %v63
    %153 = vmatpush.msra.mxu0 %v61
    %154 = vmatpush.msra.mxu0 %v59
    %155 = vmatpush.msra.mxu0 %v57
    %156 = vmatmul.f32.gmra.mxu0 %v100
    %v157 = vpop.f32.mrf.mxu0
    %v158 = vadd.f32 %v81, %v157
    %159 = vmatmul.f32.gmra.mxu0 %v103
    %v160 = vpop.f32.mrf.mxu0
    %v161 = vadd.f32 %v86, %v160
    %162 = vmatmul.f32.gmra.mxu0 %v106
    %v163 = vpop.f32.mrf.mxu0
    %v164 = vadd.f32 %v91, %v163
    %165 = vmatmul.f32.gmra.mxu0 %v109
    %v166 = vpop.f32.mrf.mxu0
    %v167 = vadd.f32 %v96, %v166
    %168 = vdwg.mxu0
    %vm169 = vcmp.gt.f32.partialorder %v129, 0.0
    %vm170 = vcmp.gt.f32.partialorder %v158, 0.0
    %vm171 = vcmp.gt.f32.partialorder %v132, 0.0
    %vm172 = vcmp.gt.f32.partialorder %v161, 0.0
    %vm173 = vcmp.gt.f32.partialorder %v135, 0.0
    %vm174 = vcmp.gt.f32.partialorder %v164, 0.0
    %vm175 = vcmp.gt.f32.partialorder %v138, 0.0
    %vm176 = vcmp.gt.f32.partialorder %v167, 0.0
    %v177 = vmin.f32 %v129, 0.0
    %v178 = vmin.f32 %v158, 0.0
    %v179 = vmin.f32 %v132, 0.0
    %v180 = vmin.f32 %v161, 0.0
    %v181 = vmin.f32 %v135, 0.0
    %v182 = vmin.f32 %v164, 0.0
    %v183 = vmin.f32 %v138, 0.0
    %v184 = vmin.f32 %v167, 0.0
    %v185 = vmul.f32 %v177, 1.442695
    %v186 = vpow.pop %v185
    %v187 = vmul.f32 %v178, 1.442695
    %v188 = vpow.pop %v187
    %v189 = vmul.f32 %v179, 1.442695
    %v190 = vpow.pop %v189
    %v191 = vmul.f32 %v180, 1.442695
    %v192 = vpow.pop %v191
    %v193 = vmul.f32 %v181, 1.442695
    %v194 = vpow.pop %v193
    %v195 = vmul.f32 %v182, 1.442695
    %v196 = vpow.pop %v195
    %v197 = vmul.f32 %v183, 1.442695
    %v198 = vpow.pop %v197
    %v199 = vmul.f32 %v184, 1.442695
    %v200 = vpow.pop %v199
    %v201 = vsub.f32 %v186, 1.0
    %v202 = vsub.f32 %v188, 1.0
    %v203 = vsub.f32 %v190, 1.0
    %v204 = vsub.f32 %v192, 1.0
    %v205 = vsub.f32 %v194, 1.0
    %v206 = vsub.f32 %v196, 1.0
    %v207 = vsub.f32 %v198, 1.0
    %v208 = vsub.f32 %v200, 1.0
    %v209 = vsel %vm169, %v129, %v201
    %v210 = vsel %vm170, %v158, %v202
    %v211 = vsel %vm171, %v132, %v203
    %v212 = vsel %vm172, %v161, %v204
    %v213 = vsel %vm173, %v135, %v205
    %v214 = vsel %vm174, %v164, %v206
    %v215 = vsel %vm175, %v138, %v207
    %v216 = vsel %vm176, %v167, %v208
    %v217 = vld [vmem:[%s3] sm:$0xff]
    %v218 = vld [vmem:[%s3 + $0x8] sm:$0xff]
    %v219 = vld [vmem:[%s3 + $0x10] sm:$0xff]
    %v220 = vld [vmem:[%s3 + $0x18] sm:$0xff]
    %v221 = vld [vmem:[%s3 + $0x20] sm:$0xff]
    %v222 = vld [vmem:[%s3 + $0x28] sm:$0xff]
    %v223 = vld [vmem:[%s3 + $0x30] sm:$0xff]
    %v224 = vld [vmem:[%s3 + $0x38] sm:$0xff]
    %v225 = vld [vmem:[%s3 + $0x40] sm:$0xff]
    %v226 = vld [vmem:[%s3 + $0x48] sm:$0xff]
    %v227 = vld [vmem:[%s3 + $0x50] sm:$0xff]
    %v228 = vld [vmem:[%s3 + $0x58] sm:$0xff]
    %v229 = vld [vmem:[%s3 + $0x60] sm:$0xff]
    %v230 = vld [vmem:[%s3 + $0x68] sm:$0xff]
    %v231 = vld [vmem:[%s3 + $0x70] sm:$0xff]
    %v232 = vld [vmem:[%s3 + $0x78] sm:$0xff]
    %v233 = vld [vmem:[%s3 + $0x80] sm:$0xff]
    %v234 = vld [vmem:[%s3 + $0x88] sm:$0xff]
    %v235 = vld [vmem:[%s3 + $0x90] sm:$0xff]
    %v236 = vld [vmem:[%s3 + $0x98] sm:$0xff]
    %v237 = vld [vmem:[%s3 + $0xa0] sm:$0xff]
    %v238 = vld [vmem:[%s3 + $0xa8] sm:$0xff]
    %v239 = vld [vmem:[%s3 + $0xb0] sm:$0xff]
    %v240 = vld [vmem:[%s3 + $0xb8] sm:$0xff]
    %v241 = vld [vmem:[%s3 + $0xc0] sm:$0xff]
    %v242 = vld [vmem:[%s3 + $0xc8] sm:$0xff]
    %v243 = vld [vmem:[%s3 + $0xd0] sm:$0xff]
    %v244 = vld [vmem:[%s3 + $0xd8] sm:$0xff]
    %v245 = vld [vmem:[%s3 + $0xe0] sm:$0xff]
    %v246 = vld [vmem:[%s3 + $0xe8] sm:$0xff]
    %v247 = vld [vmem:[%s3 + $0xf0] sm:$0xff]
    %v248 = vld [vmem:[%s3 + $0xf8] sm:$0xff]
    %249 = vmatpush.msra.mxu0 %v232
    %250 = vmatpush.msra.mxu0 %v231
    %251 = vmatpush.msra.mxu0 %v230
    %252 = vmatpush.msra.mxu0 %v229
    %253 = vmatpush.msra.mxu0 %v228
    %254 = vmatpush.msra.mxu0 %v227
    %255 = vmatpush.msra.mxu0 %v226
    %256 = vmatpush.msra.mxu0 %v225
    %257 = vmatpush.msra.mxu0 %v224
    %258 = vmatpush.msra.mxu0 %v223
    %259 = vmatpush.msra.mxu0 %v222
    %260 = vmatpush.msra.mxu0 %v221
    %261 = vmatpush.msra.mxu0 %v220
    %262 = vmatpush.msra.mxu0 %v219
    %263 = vmatpush.msra.mxu0 %v218
    %264 = vmatpush.msra.mxu0 %v217
    %265 = vmatmul.f32.gmra.mxu0 %v209
    %v266 = vpop.f32.mrf.mxu0
    %v267 = vadd.f32 0.0, %v266
    %268 = vmatmul.f32.gmra.mxu0 %v211
    %v269 = vpop.f32.mrf.mxu0
    %v270 = vadd.f32 0.0, %v269
    %271 = vmatmul.f32.gmra.mxu0 %v213
    %v272 = vpop.f32.mrf.mxu0
    %v273 = vadd.f32 0.0, %v272
    %274 = vmatmul.f32.gmra.mxu0 %v215
    %v275 = vpop.f32.mrf.mxu0
    %v276 = vadd.f32 0.0, %v275
    %277 = vdwg.mxu0
    %278 = vmatpush.msra.mxu0 %v248
    %279 = vmatpush.msra.mxu0 %v247
    %280 = vmatpush.msra.mxu0 %v246
    %281 = vmatpush.msra.mxu0 %v245
    %282 = vmatpush.msra.mxu0 %v244
    %283 = vmatpush.msra.mxu0 %v243
    %284 = vmatpush.msra.mxu0 %v242
    %285 = vmatpush.msra.mxu0 %v241
    %286 = vmatpush.msra.mxu0 %v240
    %287 = vmatpush.msra.mxu0 %v239
    %288 = vmatpush.msra.mxu0 %v238
    %289 = vmatpush.msra.mxu0 %v237
    %290 = vmatpush.msra.mxu0 %v236
    %291 = vmatpush.msra.mxu0 %v235
    %292 = vmatpush.msra.mxu0 %v234
    %293 = vmatpush.msra.mxu0 %v233
    %294 = vmatmul.f32.gmra.mxu0 %v210
    %v295 = vpop.f32.mrf.mxu0
    %v296 = vadd.f32 %v267, %v295
    %297 = vmatmul.f32.gmra.mxu0 %v212
    %v298 = vpop.f32.mrf.mxu0
    %v299 = vadd.f32 %v270, %v298
    %300 = vmatmul.f32.gmra.mxu0 %v214
    %v301 = vpop.f32.mrf.mxu0
    %v302 = vadd.f32 %v273, %v301
    %303 = vmatmul.f32.gmra.mxu0 %v216
    %v304 = vpop.f32.mrf.mxu0
    %v305 = vadd.f32 %v276, %v304
    %306 = vdwg.mxu0
    %v307 = vld [vmem:[#allocation2] sm:$0xff]
    %v308 = vld [vmem:[#allocation2 + $0x8] sm:$0xff]
    %v309 = vld [vmem:[#allocation2 + $0x10] sm:$0xff]
    %v310 = vld [vmem:[#allocation2 + $0x18] sm:$0xff]
    %s311 = scalar_lea.vmem [#allocation2], 32
    %v312 = vld [vmem:[%s311] sm:$0xff]
    %v313 = vld [vmem:[%s311 + $0x8] sm:$0xff]
    %v314 = vld [vmem:[%s311 + $0x10] sm:$0xff]
    %v315 = vld [vmem:[%s311 + $0x18] sm:$0xff]
    %320 = vrot.lane.b32.xlu0 %v296, 127
    %v321 = vpop.permute.xlu0 %320
    %322 = vrot.lane.b32.xlu0 %v299, 127
    %v323 = vpop.permute.xlu0 %322
    %324 = vrot.lane.b32.xlu0 %v302, 127
    %v325 = vpop.permute.xlu0 %324
    %326 = vrot.lane.b32.xlu0 %v305, 127
    %v327 = vpop.permute.xlu0 %326
    %vm332 = vcmask 261120
    %v334 = vsel %vm332, %v312, 0
    %v337 = vsel %vm332, %v313, 0
    %v340 = vsel %vm332, %v314, 0
    %v343 = vsel %vm332, %v315, 0
    %345 = vmatpush.msra.mxu0 0.0
    %346 = vmatpush.msra.mxu0 0.0
    %347 = vmatpush.msra.mxu0 0.0
    %348 = vmatpush.msra.mxu0 0.0
    %349 = vmatpush.msra.mxu0 0.0
    %350 = vmatpush.msra.mxu0 0.0
    %351 = vmatpush.msra.mxu0 0.0
    %352 = vmatpush.msra.mxu0 0.0
    %353 = vmatpush.msra.mxu0 0.0
    %354 = vmatpush.msra.mxu0 0.0
    %355 = vmatpush.msra.mxu0 0.0
    %356 = vmatpush.msra.mxu0 0.0
    %357 = vmatpush.msra.mxu0 %v327
    %358 = vmatpush.msra.mxu0 %v325
    %359 = vmatpush.msra.mxu0 %v323
    %360 = vmatpush.msra.mxu0 %v321
    %361 = vmatmul.f32.gmra.mxu0 %v334
    %v362 = vpop.f32.mrf.mxu0
    %v363 = vadd.f32 0.0, %v362
    %364 = vmatmul.f32.gmra.mxu0 %v337
    %v365 = vpop.f32.mrf.mxu0
    %v366 = vadd.f32 0.0, %v365
    %367 = vmatmul.f32.gmra.mxu0 %v340
    %v368 = vpop.f32.mrf.mxu0
    %v369 = vadd.f32 0.0, %v368
    %370 = vmatmul.f32.gmra.mxu0 %v343
    %v371 = vpop.f32.mrf.mxu0
    %v372 = vadd.f32 0.0, %v371
    %373 = vdwg.mxu0
    %v375 = vsel %vm332, %v307, 0
    %v378 = vsel %vm332, %v308, 0
    %v381 = vsel %vm332, %v309, 0
    %v384 = vsel %vm332, %v310, 0
    %386 = vmatpush.msra.mxu0 0.0
    %387 = vmatpush.msra.mxu0 0.0
    %388 = vmatpush.msra.mxu0 0.0
    %389 = vmatpush.msra.mxu0 0.0
    %390 = vmatpush.msra.mxu0 0.0
    %391 = vmatpush.msra.mxu0 0.0
    %392 = vmatpush.msra.mxu0 0.0
    %393 = vmatpush.msra.mxu0 0.0
    %394 = vmatpush.msra.mxu0 0.0
    %395 = vmatpush.msra.mxu0 0.0
    %396 = vmatpush.msra.mxu0 0.0
    %397 = vmatpush.msra.mxu0 0.0
    %398 = vmatpush.msra.mxu0 %v305
    %399 = vmatpush.msra.mxu0 %v302
    %400 = vmatpush.msra.mxu0 %v299
    %401 = vmatpush.msra.mxu0 %v296
    %402 = vmatmul.f32.gmra.mxu0 %v375
    %v403 = vpop.f32.mrf.mxu0
    %v404 = vadd.f32 %v363, %v403
    %405 = vmatmul.f32.gmra.mxu0 %v378
    %v406 = vpop.f32.mrf.mxu0
    %v407 = vadd.f32 %v366, %v406
    %408 = vmatmul.f32.gmra.mxu0 %v381
    %v409 = vpop.f32.mrf.mxu0
    %v410 = vadd.f32 %v369, %v409
    %411 = vmatmul.f32.gmra.mxu0 %v384
    %v412 = vpop.f32.mrf.mxu0
    %v413 = vadd.f32 %v372, %v412
    %414 = vdwg.mxu0
    %s415 = scalar_lea.vmem [#allocation2], 64
    %v416 = vld [vmem:[%s415] sm:$0xff]
    %v417 = vld [vmem:[%s415 + $0x8] sm:$0xff]
    %v418 = vld [vmem:[%s415 + $0x10] sm:$0xff]
    %v419 = vld [vmem:[%s415 + $0x18] sm:$0xff]
    %420 = vrot.lane.b32.xlu0 %v296, 126
    %v421 = vpop.permute.xlu0 %420
    %422 = vrot.lane.b32.xlu0 %v299, 126
    %v423 = vpop.permute.xlu0 %422
    %424 = vrot.lane.b32.xlu0 %v302, 126
    %v425 = vpop.permute.xlu0 %424
    %426 = vrot.lane.b32.xlu0 %v305, 126
    %v427 = vpop.permute.xlu0 %426
    %v433 = vsel %vm332, %v416, 0
    %v436 = vsel %vm332, %v417, 0
    %v439 = vsel %vm332, %v418, 0
    %v442 = vsel %vm332, %v419, 0
    %444 = vmatpush.msra.mxu0 0.0
    %445 = vmatpush.msra.mxu0 0.0
    %446 = vmatpush.msra.mxu0 0.0
    %447 = vmatpush.msra.mxu0 0.0
    %448 = vmatpush.msra.mxu0 0.0
    %449 = vmatpush.msra.mxu0 0.0
    %450 = vmatpush.msra.mxu0 0.0
    %451 = vmatpush.msra.mxu0 0.0
    %452 = vmatpush.msra.mxu0 0.0
    %453 = vmatpush.msra.mxu0 0.0
    %454 = vmatpush.msra.mxu0 0.0
    %455 = vmatpush.msra.mxu0 0.0
    %456 = vmatpush.msra.mxu0 %v427
    %457 = vmatpush.msra.mxu0 %v425
    %458 = vmatpush.msra.mxu0 %v423
    %459 = vmatpush.msra.mxu0 %v421
    %460 = vmatmul.f32.gmra.mxu0 %v433
    %v461 = vpop.f32.mrf.mxu0
    %v462 = vadd.f32 0.0, %v461
    %463 = vmatmul.f32.gmra.mxu0 %v436
    %v464 = vpop.f32.mrf.mxu0
    %v465 = vadd.f32 0.0, %v464
    %466 = vmatmul.f32.gmra.mxu0 %v439
    %v467 = vpop.f32.mrf.mxu0
    %v468 = vadd.f32 0.0, %v467
    %469 = vmatmul.f32.gmra.mxu0 %v442
    %v470 = vpop.f32.mrf.mxu0
    %v471 = vadd.f32 0.0, %v470
    %472 = vdwg.mxu0
    %v473 = vadd.f32 %v404, %v462
    %v474 = vadd.f32 %v407, %v465
    %v475 = vadd.f32 %v410, %v468
    %v476 = vadd.f32 %v413, %v471
    %s477 = scalar_lea.vmem [#allocation2], 96
    %v478 = vld [vmem:[%s477] sm:$0xff]
    %v479 = vld [vmem:[%s477 + $0x8] sm:$0xff]
    %v480 = vld [vmem:[%s477 + $0x10] sm:$0xff]
    %v481 = vld [vmem:[%s477 + $0x18] sm:$0xff]
    %482 = vrot.lane.b32.xlu0 %v296, 125
    %v483 = vpop.permute.xlu0 %482
    %484 = vrot.lane.b32.xlu0 %v299, 125
    %v485 = vpop.permute.xlu0 %484
    %486 = vrot.lane.b32.xlu0 %v302, 125
    %v487 = vpop.permute.xlu0 %486
    %488 = vrot.lane.b32.xlu0 %v305, 125
    %v489 = vpop.permute.xlu0 %488
    %v495 = vsel %vm332, %v478, 0
    %v498 = vsel %vm332, %v479, 0
    %v501 = vsel %vm332, %v480, 0
    %v504 = vsel %vm332, %v481, 0
    %506 = vmatpush.msra.mxu0 0.0
    %507 = vmatpush.msra.mxu0 0.0
    %508 = vmatpush.msra.mxu0 0.0
    %509 = vmatpush.msra.mxu0 0.0
    %510 = vmatpush.msra.mxu0 0.0
    %511 = vmatpush.msra.mxu0 0.0
    %512 = vmatpush.msra.mxu0 0.0
    %513 = vmatpush.msra.mxu0 0.0
    %514 = vmatpush.msra.mxu0 0.0
    %515 = vmatpush.msra.mxu0 0.0
    %516 = vmatpush.msra.mxu0 0.0
    %517 = vmatpush.msra.mxu0 0.0
    %518 = vmatpush.msra.mxu0 %v489
    %519 = vmatpush.msra.mxu0 %v487
    %520 = vmatpush.msra.mxu0 %v485
    %521 = vmatpush.msra.mxu0 %v483
    %522 = vmatmul.f32.gmra.mxu0 %v495
    %v523 = vpop.f32.mrf.mxu0
    %v524 = vadd.f32 0.0, %v523
    %525 = vmatmul.f32.gmra.mxu0 %v498
    %v526 = vpop.f32.mrf.mxu0
    %v527 = vadd.f32 0.0, %v526
    %528 = vmatmul.f32.gmra.mxu0 %v501
    %v529 = vpop.f32.mrf.mxu0
    %v530 = vadd.f32 0.0, %v529
    %531 = vmatmul.f32.gmra.mxu0 %v504
    %v532 = vpop.f32.mrf.mxu0
    %v533 = vadd.f32 0.0, %v532
    %534 = vdwg.mxu0
    %v535 = vadd.f32 %v473, %v524
    %v536 = vadd.f32 %v474, %v527
    %v537 = vadd.f32 %v475, %v530
    %v538 = vadd.f32 %v476, %v533
    %s539 = scalar_lea.vmem [#allocation2], 128
    %v540 = vld [vmem:[%s539] sm:$0xff]
    %v541 = vld [vmem:[%s539 + $0x8] sm:$0xff]
    %v542 = vld [vmem:[%s539 + $0x10] sm:$0xff]
    %v543 = vld [vmem:[%s539 + $0x18] sm:$0xff]
    %544 = vrot.lane.b32.xlu0 %v296, 124
    %v545 = vpop.permute.xlu0 %544
    %546 = vrot.lane.b32.xlu0 %v299, 124
    %v547 = vpop.permute.xlu0 %546
    %548 = vrot.lane.b32.xlu0 %v302, 124
    %v549 = vpop.permute.xlu0 %548
    %550 = vrot.lane.b32.xlu0 %v305, 124
    %v551 = vpop.permute.xlu0 %550
    %v557 = vsel %vm332, %v540, 0
    %v560 = vsel %vm332, %v541, 0
    %v563 = vsel %vm332, %v542, 0
    %v566 = vsel %vm332, %v543, 0
    %568 = vmatpush.msra.mxu0 0.0
    %569 = vmatpush.msra.mxu0 0.0
    %570 = vmatpush.msra.mxu0 0.0
    %571 = vmatpush.msra.mxu0 0.0
    %572 = vmatpush.msra.mxu0 0.0
    %573 = vmatpush.msra.mxu0 0.0
    %574 = vmatpush.msra.mxu0 0.0
    %575 = vmatpush.msra.mxu0 0.0
    %576 = vmatpush.msra.mxu0 0.0
    %577 = vmatpush.msra.mxu0 0.0
    %578 = vmatpush.msra.mxu0 0.0
    %579 = vmatpush.msra.mxu0 0.0
    %580 = vmatpush.msra.mxu0 %v551
    %581 = vmatpush.msra.mxu0 %v549
    %582 = vmatpush.msra.mxu0 %v547
    %583 = vmatpush.msra.mxu0 %v545
    %584 = vmatmul.f32.gmra.mxu0 %v557
    %v585 = vpop.f32.mrf.mxu0
    %v586 = vadd.f32 0.0, %v585
    %587 = vmatmul.f32.gmra.mxu0 %v560
    %v588 = vpop.f32.mrf.mxu0
    %v589 = vadd.f32 0.0, %v588
    %590 = vmatmul.f32.gmra.mxu0 %v563
    %v591 = vpop.f32.mrf.mxu0
    %v592 = vadd.f32 0.0, %v591
    %593 = vmatmul.f32.gmra.mxu0 %v566
    %v594 = vpop.f32.mrf.mxu0
    %v595 = vadd.f32 0.0, %v594
    %596 = vdwg.mxu0
    %v597 = vadd.f32 %v535, %v586
    %v598 = vadd.f32 %v536, %v589
    %v599 = vadd.f32 %v537, %v592
    %v600 = vadd.f32 %v538, %v595
    %s601 = scalar_lea.vmem [#allocation2], 160
    %v602 = vld [vmem:[%s601] sm:$0xff]
    %v603 = vld [vmem:[%s601 + $0x8] sm:$0xff]
    %v604 = vld [vmem:[%s601 + $0x10] sm:$0xff]
    %v605 = vld [vmem:[%s601 + $0x18] sm:$0xff]
    %606 = vrot.lane.b32.xlu0 %v296, 123
    %v607 = vpop.permute.xlu0 %606
    %608 = vrot.lane.b32.xlu0 %v299, 123
    %v609 = vpop.permute.xlu0 %608
    %610 = vrot.lane.b32.xlu0 %v302, 123
    %v611 = vpop.permute.xlu0 %610
    %612 = vrot.lane.b32.xlu0 %v305, 123
    %v613 = vpop.permute.xlu0 %612
    %v619 = vsel %vm332, %v602, 0
    %v622 = vsel %vm332, %v603, 0
    %v625 = vsel %vm332, %v604, 0
    %v628 = vsel %vm332, %v605, 0
    %630 = vmatpush.msra.mxu0 0.0
    %631 = vmatpush.msra.mxu0 0.0
    %632 = vmatpush.msra.mxu0 0.0
    %633 = vmatpush.msra.mxu0 0.0
    %634 = vmatpush.msra.mxu0 0.0
    %635 = vmatpush.msra.mxu0 0.0
    %636 = vmatpush.msra.mxu0 0.0
    %637 = vmatpush.msra.mxu0 0.0
    %638 = vmatpush.msra.mxu0 0.0
    %639 = vmatpush.msra.mxu0 0.0
    %640 = vmatpush.msra.mxu0 0.0
    %641 = vmatpush.msra.mxu0 0.0
    %642 = vmatpush.msra.mxu0 %v613
    %643 = vmatpush.msra.mxu0 %v611
    %644 = vmatpush.msra.mxu0 %v609
    %645 = vmatpush.msra.mxu0 %v607
    %646 = vmatmul.f32.gmra.mxu0 %v619
    %v647 = vpop.f32.mrf.mxu0
    %v648 = vadd.f32 0.0, %v647
    %649 = vmatmul.f32.gmra.mxu0 %v622
    %v650 = vpop.f32.mrf.mxu0
    %v651 = vadd.f32 0.0, %v650
    %652 = vmatmul.f32.gmra.mxu0 %v625
    %v653 = vpop.f32.mrf.mxu0
    %v654 = vadd.f32 0.0, %v653
    %655 = vmatmul.f32.gmra.mxu0 %v628
    %v656 = vpop.f32.mrf.mxu0
    %v657 = vadd.f32 0.0, %v656
    %658 = vdwg.mxu0
    %v659 = vadd.f32 %v597, %v648
    %v660 = vadd.f32 %v598, %v651
    %v661 = vadd.f32 %v599, %v654
    %v662 = vadd.f32 %v600, %v657
    %s663 = scalar_lea.vmem [#allocation2], 192
    %v664 = vld [vmem:[%s663] sm:$0xff]
    %v665 = vld [vmem:[%s663 + $0x8] sm:$0xff]
    %v666 = vld [vmem:[%s663 + $0x10] sm:$0xff]
    %v667 = vld [vmem:[%s663 + $0x18] sm:$0xff]
    %668 = vrot.lane.b32.xlu0 %v296, 122
    %v669 = vpop.permute.xlu0 %668
    %670 = vrot.lane.b32.xlu0 %v299, 122
    %v671 = vpop.permute.xlu0 %670
    %672 = vrot.lane.b32.xlu0 %v302, 122
    %v673 = vpop.permute.xlu0 %672
    %674 = vrot.lane.b32.xlu0 %v305, 122
    %v675 = vpop.permute.xlu0 %674
    %v681 = vsel %vm332, %v664, 0
    %v684 = vsel %vm332, %v665, 0
    %v687 = vsel %vm332, %v666, 0
    %v690 = vsel %vm332, %v667, 0
    %692 = vmatpush.msra.mxu0 0.0
    %693 = vmatpush.msra.mxu0 0.0
    %694 = vmatpush.msra.mxu0 0.0
    %695 = vmatpush.msra.mxu0 0.0
    %696 = vmatpush.msra.mxu0 0.0
    %697 = vmatpush.msra.mxu0 0.0
    %698 = vmatpush.msra.mxu0 0.0
    %699 = vmatpush.msra.mxu0 0.0
    %700 = vmatpush.msra.mxu0 0.0
    %701 = vmatpush.msra.mxu0 0.0
    %702 = vmatpush.msra.mxu0 0.0
    %703 = vmatpush.msra.mxu0 0.0
    %704 = vmatpush.msra.mxu0 %v675
    %705 = vmatpush.msra.mxu0 %v673
    %706 = vmatpush.msra.mxu0 %v671
    %707 = vmatpush.msra.mxu0 %v669
    %708 = vmatmul.f32.gmra.mxu0 %v681
    %v709 = vpop.f32.mrf.mxu0
    %v710 = vadd.f32 0.0, %v709
    %711 = vmatmul.f32.gmra.mxu0 %v684
    %v712 = vpop.f32.mrf.mxu0
    %v713 = vadd.f32 0.0, %v712
    %714 = vmatmul.f32.gmra.mxu0 %v687
    %v715 = vpop.f32.mrf.mxu0
    %v716 = vadd.f32 0.0, %v715
    %717 = vmatmul.f32.gmra.mxu0 %v690
    %v718 = vpop.f32.mrf.mxu0
    %v719 = vadd.f32 0.0, %v718
    %720 = vdwg.mxu0
    %v721 = vadd.f32 %v659, %v710
    %v722 = vadd.f32 %v660, %v713
    %v723 = vadd.f32 %v661, %v716
    %v724 = vadd.f32 %v662, %v719
    %s725 = scalar_lea.vmem [#allocation2], 224
    %v726 = vld [vmem:[%s725] sm:$0xff]
    %v727 = vld [vmem:[%s725 + $0x8] sm:$0xff]
    %v728 = vld [vmem:[%s725 + $0x10] sm:$0xff]
    %v729 = vld [vmem:[%s725 + $0x18] sm:$0xff]
    %730 = vrot.lane.b32.xlu0 %v296, 121
    %v731 = vpop.permute.xlu0 %730
    %732 = vrot.lane.b32.xlu0 %v299, 121
    %v733 = vpop.permute.xlu0 %732
    %734 = vrot.lane.b32.xlu0 %v302, 121
    %v735 = vpop.permute.xlu0 %734
    %736 = vrot.lane.b32.xlu0 %v305, 121
    %v737 = vpop.permute.xlu0 %736
    %v743 = vsel %vm332, %v726, 0
    %v746 = vsel %vm332, %v727, 0
    %v749 = vsel %vm332, %v728, 0
    %v752 = vsel %vm332, %v729, 0
    %754 = vmatpush.msra.mxu0 0.0
    %755 = vmatpush.msra.mxu0 0.0
    %756 = vmatpush.msra.mxu0 0.0
    %757 = vmatpush.msra.mxu0 0.0
    %758 = vmatpush.msra.mxu0 0.0
    %759 = vmatpush.msra.mxu0 0.0
    %760 = vmatpush.msra.mxu0 0.0
    %761 = vmatpush.msra.mxu0 0.0
    %762 = vmatpush.msra.mxu0 0.0
    %763 = vmatpush.msra.mxu0 0.0
    %764 = vmatpush.msra.mxu0 0.0
    %765 = vmatpush.msra.mxu0 0.0
    %766 = vmatpush.msra.mxu0 %v737
    %767 = vmatpush.msra.mxu0 %v735
    %768 = vmatpush.msra.mxu0 %v733
    %769 = vmatpush.msra.mxu0 %v731
    %770 = vmatmul.f32.gmra.mxu0 %v743
    %v771 = vpop.f32.mrf.mxu0
    %v772 = vadd.f32 0.0, %v771
    %773 = vmatmul.f32.gmra.mxu0 %v746
    %v774 = vpop.f32.mrf.mxu0
    %v775 = vadd.f32 0.0, %v774
    %776 = vmatmul.f32.gmra.mxu0 %v749
    %v777 = vpop.f32.mrf.mxu0
    %v778 = vadd.f32 0.0, %v777
    %779 = vmatmul.f32.gmra.mxu0 %v752
    %v780 = vpop.f32.mrf.mxu0
    %v781 = vadd.f32 0.0, %v780
    %782 = vdwg.mxu0
    %v783 = vadd.f32 %v721, %v772
    %v784 = vadd.f32 %v722, %v775
    %v785 = vadd.f32 %v723, %v778
    %v786 = vadd.f32 %v724, %v781
    %s787 = scalar_lea.vmem [#allocation2], 256
    %v788 = vld [vmem:[%s787] sm:$0xff]
    %v789 = vld [vmem:[%s787 + $0x8] sm:$0xff]
    %v790 = vld [vmem:[%s787 + $0x10] sm:$0xff]
    %v791 = vld [vmem:[%s787 + $0x18] sm:$0xff]
    %792 = vrot.lane.b32.xlu0 %v296, 120
    %v793 = vpop.permute.xlu0 %792
    %794 = vrot.lane.b32.xlu0 %v299, 120
    %v795 = vpop.permute.xlu0 %794
    %796 = vrot.lane.b32.xlu0 %v302, 120
    %v797 = vpop.permute.xlu0 %796
    %798 = vrot.lane.b32.xlu0 %v305, 120
    %v799 = vpop.permute.xlu0 %798
    %v805 = vsel %vm332, %v788, 0
    %v808 = vsel %vm332, %v789, 0
    %v811 = vsel %vm332, %v790, 0
    %v814 = vsel %vm332, %v791, 0
    %816 = vmatpush.msra.mxu0 0.0
    %817 = vmatpush.msra.mxu0 0.0
    %818 = vmatpush.msra.mxu0 0.0
    %819 = vmatpush.msra.mxu0 0.0
    %820 = vmatpush.msra.mxu0 0.0
    %821 = vmatpush.msra.mxu0 0.0
    %822 = vmatpush.msra.mxu0 0.0
    %823 = vmatpush.msra.mxu0 0.0
    %824 = vmatpush.msra.mxu0 0.0
    %825 = vmatpush.msra.mxu0 0.0
    %826 = vmatpush.msra.mxu0 0.0
    %827 = vmatpush.msra.mxu0 0.0
    %828 = vmatpush.msra.mxu0 %v799
    %829 = vmatpush.msra.mxu0 %v797
    %830 = vmatpush.msra.mxu0 %v795
    %831 = vmatpush.msra.mxu0 %v793
    %832 = vmatmul.f32.gmra.mxu0 %v805
    %v833 = vpop.f32.mrf.mxu0
    %v834 = vadd.f32 0.0, %v833
    %835 = vmatmul.f32.gmra.mxu0 %v808
    %v836 = vpop.f32.mrf.mxu0
    %v837 = vadd.f32 0.0, %v836
    %838 = vmatmul.f32.gmra.mxu0 %v811
    %v839 = vpop.f32.mrf.mxu0
    %v840 = vadd.f32 0.0, %v839
    %841 = vmatmul.f32.gmra.mxu0 %v814
    %v842 = vpop.f32.mrf.mxu0
    %v843 = vadd.f32 0.0, %v842
    %844 = vdwg.mxu0
    %v845 = vadd.f32 %v783, %v834
    %v846 = vadd.f32 %v784, %v837
    %v847 = vadd.f32 %v785, %v840
    %v848 = vadd.f32 %v786, %v843
    %s849 = scalar_lea.vmem [#allocation2], 288
    %v850 = vld [vmem:[%s849] sm:$0xff]
    %v851 = vld [vmem:[%s849 + $0x8] sm:$0xff]
    %v852 = vld [vmem:[%s849 + $0x10] sm:$0xff]
    %v853 = vld [vmem:[%s849 + $0x18] sm:$0xff]
    %854 = vrot.lane.b32.xlu0 %v296, 119
    %v855 = vpop.permute.xlu0 %854
    %856 = vrot.lane.b32.xlu0 %v299, 119
    %v857 = vpop.permute.xlu0 %856
    %858 = vrot.lane.b32.xlu0 %v302, 119
    %v859 = vpop.permute.xlu0 %858
    %860 = vrot.lane.b32.xlu0 %v305, 119
    %v861 = vpop.permute.xlu0 %860
    %v867 = vsel %vm332, %v850, 0
    %v870 = vsel %vm332, %v851, 0
    %v873 = vsel %vm332, %v852, 0
    %v876 = vsel %vm332, %v853, 0
    %878 = vmatpush.msra.mxu0 0.0
    %879 = vmatpush.msra.mxu0 0.0
    %880 = vmatpush.msra.mxu0 0.0
    %881 = vmatpush.msra.mxu0 0.0
    %882 = vmatpush.msra.mxu0 0.0
    %883 = vmatpush.msra.mxu0 0.0
    %884 = vmatpush.msra.mxu0 0.0
    %885 = vmatpush.msra.mxu0 0.0
    %886 = vmatpush.msra.mxu0 0.0
    %887 = vmatpush.msra.mxu0 0.0
    %888 = vmatpush.msra.mxu0 0.0
    %889 = vmatpush.msra.mxu0 0.0
    %890 = vmatpush.msra.mxu0 %v861
    %891 = vmatpush.msra.mxu0 %v859
    %892 = vmatpush.msra.mxu0 %v857
    %893 = vmatpush.msra.mxu0 %v855
    %894 = vmatmul.f32.gmra.mxu0 %v867
    %v895 = vpop.f32.mrf.mxu0
    %v896 = vadd.f32 0.0, %v895
    %897 = vmatmul.f32.gmra.mxu0 %v870
    %v898 = vpop.f32.mrf.mxu0
    %v899 = vadd.f32 0.0, %v898
    %900 = vmatmul.f32.gmra.mxu0 %v873
    %v901 = vpop.f32.mrf.mxu0
    %v902 = vadd.f32 0.0, %v901
    %903 = vmatmul.f32.gmra.mxu0 %v876
    %v904 = vpop.f32.mrf.mxu0
    %v905 = vadd.f32 0.0, %v904
    %906 = vdwg.mxu0
    %v907 = vadd.f32 %v845, %v896
    %v908 = vadd.f32 %v846, %v899
    %v909 = vadd.f32 %v847, %v902
    %v910 = vadd.f32 %v848, %v905
    %s911 = scalar_lea.vmem [#allocation2], 320
    %v912 = vld [vmem:[%s911] sm:$0xff]
    %v913 = vld [vmem:[%s911 + $0x8] sm:$0xff]
    %v914 = vld [vmem:[%s911 + $0x10] sm:$0xff]
    %v915 = vld [vmem:[%s911 + $0x18] sm:$0xff]
    %916 = vrot.lane.b32.xlu0 %v296, 118
    %v917 = vpop.permute.xlu0 %916
    %918 = vrot.lane.b32.xlu0 %v299, 118
    %v919 = vpop.permute.xlu0 %918
    %920 = vrot.lane.b32.xlu0 %v302, 118
    %v921 = vpop.permute.xlu0 %920
    %922 = vrot.lane.b32.xlu0 %v305, 118
    %v923 = vpop.permute.xlu0 %922
    %v929 = vsel %vm332, %v912, 0
    %v932 = vsel %vm332, %v913, 0
    %v935 = vsel %vm332, %v914, 0
    %v938 = vsel %vm332, %v915, 0
    %940 = vmatpush.msra.mxu0 0.0
    %941 = vmatpush.msra.mxu0 0.0
    %942 = vmatpush.msra.mxu0 0.0
    %943 = vmatpush.msra.mxu0 0.0
    %944 = vmatpush.msra.mxu0 0.0
    %945 = vmatpush.msra.mxu0 0.0
    %946 = vmatpush.msra.mxu0 0.0
    %947 = vmatpush.msra.mxu0 0.0
    %948 = vmatpush.msra.mxu0 0.0
    %949 = vmatpush.msra.mxu0 0.0
    %950 = vmatpush.msra.mxu0 0.0
    %951 = vmatpush.msra.mxu0 0.0
    %952 = vmatpush.msra.mxu0 %v923
    %953 = vmatpush.msra.mxu0 %v921
    %954 = vmatpush.msra.mxu0 %v919
    %955 = vmatpush.msra.mxu0 %v917
    %956 = vmatmul.f32.gmra.mxu0 %v929
    %v957 = vpop.f32.mrf.mxu0
    %v958 = vadd.f32 0.0, %v957
    %959 = vmatmul.f32.gmra.mxu0 %v932
    %v960 = vpop.f32.mrf.mxu0
    %v961 = vadd.f32 0.0, %v960
    %962 = vmatmul.f32.gmra.mxu0 %v935
    %v963 = vpop.f32.mrf.mxu0
    %v964 = vadd.f32 0.0, %v963
    %965 = vmatmul.f32.gmra.mxu0 %v938
    %v966 = vpop.f32.mrf.mxu0
    %v967 = vadd.f32 0.0, %v966
    %968 = vdwg.mxu0
    %v969 = vadd.f32 %v907, %v958
    %v970 = vadd.f32 %v908, %v961
    %v971 = vadd.f32 %v909, %v964
    %v972 = vadd.f32 %v910, %v967
    %s973 = scalar_lea.vmem [#allocation2], 352
    %v974 = vld [vmem:[%s973] sm:$0xff]
    %v975 = vld [vmem:[%s973 + $0x8] sm:$0xff]
    %v976 = vld [vmem:[%s973 + $0x10] sm:$0xff]
    %v977 = vld [vmem:[%s973 + $0x18] sm:$0xff]
    %978 = vrot.lane.b32.xlu0 %v296, 117
    %v979 = vpop.permute.xlu0 %978
    %980 = vrot.lane.b32.xlu0 %v299, 117
    %v981 = vpop.permute.xlu0 %980
    %982 = vrot.lane.b32.xlu0 %v302, 117
    %v983 = vpop.permute.xlu0 %982
    %984 = vrot.lane.b32.xlu0 %v305, 117
    %v985 = vpop.permute.xlu0 %984
    %v991 = vsel %vm332, %v974, 0
    %v994 = vsel %vm332, %v975, 0
    %v997 = vsel %vm332, %v976, 0
    %v1000 = vsel %vm332, %v977, 0
    %1002 = vmatpush.msra.mxu0 0.0
    %1003 = vmatpush.msra.mxu0 0.0
    %1004 = vmatpush.msra.mxu0 0.0
    %1005 = vmatpush.msra.mxu0 0.0
    %1006 = vmatpush.msra.mxu0 0.0
    %1007 = vmatpush.msra.mxu0 0.0
    %1008 = vmatpush.msra.mxu0 0.0
    %1009 = vmatpush.msra.mxu0 0.0
    %1010 = vmatpush.msra.mxu0 0.0
    %1011 = vmatpush.msra.mxu0 0.0
    %1012 = vmatpush.msra.mxu0 0.0
    %1013 = vmatpush.msra.mxu0 0.0
    %1014 = vmatpush.msra.mxu0 %v985
    %1015 = vmatpush.msra.mxu0 %v983
    %1016 = vmatpush.msra.mxu0 %v981
    %1017 = vmatpush.msra.mxu0 %v979
    %1018 = vmatmul.f32.gmra.mxu0 %v991
    %v1019 = vpop.f32.mrf.mxu0
    %v1020 = vadd.f32 0.0, %v1019
    %1021 = vmatmul.f32.gmra.mxu0 %v994
    %v1022 = vpop.f32.mrf.mxu0
    %v1023 = vadd.f32 0.0, %v1022
    %1024 = vmatmul.f32.gmra.mxu0 %v997
    %v1025 = vpop.f32.mrf.mxu0
    %v1026 = vadd.f32 0.0, %v1025
    %1027 = vmatmul.f32.gmra.mxu0 %v1000
    %v1028 = vpop.f32.mrf.mxu0
    %v1029 = vadd.f32 0.0, %v1028
    %1030 = vdwg.mxu0
    %v1031 = vadd.f32 %v969, %v1020
    %v1032 = vadd.f32 %v970, %v1023
    %v1033 = vadd.f32 %v971, %v1026
    %v1034 = vadd.f32 %v972, %v1029
    %s1035 = scalar_lea.vmem [#allocation2], 384
    %v1036 = vld [vmem:[%s1035] sm:$0xff]
    %v1037 = vld [vmem:[%s1035 + $0x8] sm:$0xff]
    %v1038 = vld [vmem:[%s1035 + $0x10] sm:$0xff]
    %v1039 = vld [vmem:[%s1035 + $0x18] sm:$0xff]
    %1040 = vrot.lane.b32.xlu0 %v296, 116
    %v1041 = vpop.permute.xlu0 %1040
    %1042 = vrot.lane.b32.xlu0 %v299, 116
    %v1043 = vpop.permute.xlu0 %1042
    %1044 = vrot.lane.b32.xlu0 %v302, 116
    %v1045 = vpop.permute.xlu0 %1044
    %1046 = vrot.lane.b32.xlu0 %v305, 116
    %v1047 = vpop.permute.xlu0 %1046
    %v1053 = vsel %vm332, %v1036, 0
    %v1056 = vsel %vm332, %v1037, 0
    %v1059 = vsel %vm332, %v1038, 0
    %v1062 = vsel %vm332, %v1039, 0
    %1064 = vmatpush.msra.mxu0 0.0
    %1065 = vmatpush.msra.mxu0 0.0
    %1066 = vmatpush.msra.mxu0 0.0
    %1067 = vmatpush.msra.mxu0 0.0
    %1068 = vmatpush.msra.mxu0 0.0
    %1069 = vmatpush.msra.mxu0 0.0
    %1070 = vmatpush.msra.mxu0 0.0
    %1071 = vmatpush.msra.mxu0 0.0
    %1072 = vmatpush.msra.mxu0 0.0
    %1073 = vmatpush.msra.mxu0 0.0
    %1074 = vmatpush.msra.mxu0 0.0
    %1075 = vmatpush.msra.mxu0 0.0
    %1076 = vmatpush.msra.mxu0 %v1047
    %1077 = vmatpush.msra.mxu0 %v1045
    %1078 = vmatpush.msra.mxu0 %v1043
    %1079 = vmatpush.msra.mxu0 %v1041
    %1080 = vmatmul.f32.gmra.mxu0 %v1053
    %v1081 = vpop.f32.mrf.mxu0
    %v1082 = vadd.f32 0.0, %v1081
    %1083 = vmatmul.f32.gmra.mxu0 %v1056
    %v1084 = vpop.f32.mrf.mxu0
    %v1085 = vadd.f32 0.0, %v1084
    %1086 = vmatmul.f32.gmra.mxu0 %v1059
    %v1087 = vpop.f32.mrf.mxu0
    %v1088 = vadd.f32 0.0, %v1087
    %1089 = vmatmul.f32.gmra.mxu0 %v1062
    %v1090 = vpop.f32.mrf.mxu0
    %v1091 = vadd.f32 0.0, %v1090
    %1092 = vdwg.mxu0
    %v1093 = vadd.f32 %v1031, %v1082
    %v1094 = vadd.f32 %v1032, %v1085
    %v1095 = vadd.f32 %v1033, %v1088
    %v1096 = vadd.f32 %v1034, %v1091
    %s1097 = scalar_lea.vmem [#allocation2], 416
    %v1098 = vld [vmem:[%s1097] sm:$0xff]
    %v1099 = vld [vmem:[%s1097 + $0x8] sm:$0xff]
    %v1100 = vld [vmem:[%s1097 + $0x10] sm:$0xff]
    %v1101 = vld [vmem:[%s1097 + $0x18] sm:$0xff]
    %1102 = vrot.lane.b32.xlu0 %v296, 115
    %v1103 = vpop.permute.xlu0 %1102
    %1104 = vrot.lane.b32.xlu0 %v299, 115
    %v1105 = vpop.permute.xlu0 %1104
    %1106 = vrot.lane.b32.xlu0 %v302, 115
    %v1107 = vpop.permute.xlu0 %1106
    %1108 = vrot.lane.b32.xlu0 %v305, 115
    %v1109 = vpop.permute.xlu0 %1108
    %v1115 = vsel %vm332, %v1098, 0
    %v1118 = vsel %vm332, %v1099, 0
    %v1121 = vsel %vm332, %v1100, 0
    %v1124 = vsel %vm332, %v1101, 0
    %1126 = vmatpush.msra.mxu0 0.0
    %1127 = vmatpush.msra.mxu0 0.0
    %1128 = vmatpush.msra.mxu0 0.0
    %1129 = vmatpush.msra.mxu0 0.0
    %1130 = vmatpush.msra.mxu0 0.0
    %1131 = vmatpush.msra.mxu0 0.0
    %1132 = vmatpush.msra.mxu0 0.0
    %1133 = vmatpush.msra.mxu0 0.0
    %1134 = vmatpush.msra.mxu0 0.0
    %1135 = vmatpush.msra.mxu0 0.0
    %1136 = vmatpush.msra.mxu0 0.0
    %1137 = vmatpush.msra.mxu0 0.0
    %1138 = vmatpush.msra.mxu0 %v1109
    %1139 = vmatpush.msra.mxu0 %v1107
    %1140 = vmatpush.msra.mxu0 %v1105
    %1141 = vmatpush.msra.mxu0 %v1103
    %1142 = vmatmul.f32.gmra.mxu0 %v1115
    %v1143 = vpop.f32.mrf.mxu0
    %v1144 = vadd.f32 0.0, %v1143
    %1145 = vmatmul.f32.gmra.mxu0 %v1118
    %v1146 = vpop.f32.mrf.mxu0
    %v1147 = vadd.f32 0.0, %v1146
    %1148 = vmatmul.f32.gmra.mxu0 %v1121
    %v1149 = vpop.f32.mrf.mxu0
    %v1150 = vadd.f32 0.0, %v1149
    %1151 = vmatmul.f32.gmra.mxu0 %v1124
    %v1152 = vpop.f32.mrf.mxu0
    %v1153 = vadd.f32 0.0, %v1152
    %1154 = vdwg.mxu0
    %v1155 = vadd.f32 %v1093, %v1144
    %v1156 = vadd.f32 %v1094, %v1147
    %v1157 = vadd.f32 %v1095, %v1150
    %v1158 = vadd.f32 %v1096, %v1153
    %s1159 = scalar_lea.vmem [#allocation2], 448
    %v1160 = vld [vmem:[%s1159] sm:$0xff]
    %v1161 = vld [vmem:[%s1159 + $0x8] sm:$0xff]
    %v1162 = vld [vmem:[%s1159 + $0x10] sm:$0xff]
    %v1163 = vld [vmem:[%s1159 + $0x18] sm:$0xff]
    %1164 = vrot.lane.b32.xlu0 %v296, 114
    %v1165 = vpop.permute.xlu0 %1164
    %1166 = vrot.lane.b32.xlu0 %v299, 114
    %v1167 = vpop.permute.xlu0 %1166
    %1168 = vrot.lane.b32.xlu0 %v302, 114
    %v1169 = vpop.permute.xlu0 %1168
    %1170 = vrot.lane.b32.xlu0 %v305, 114
    %v1171 = vpop.permute.xlu0 %1170
    %v1177 = vsel %vm332, %v1160, 0
    %v1180 = vsel %vm332, %v1161, 0
    %v1183 = vsel %vm332, %v1162, 0
    %v1186 = vsel %vm332, %v1163, 0
    %1188 = vmatpush.msra.mxu0 0.0
    %1189 = vmatpush.msra.mxu0 0.0
    %1190 = vmatpush.msra.mxu0 0.0
    %1191 = vmatpush.msra.mxu0 0.0
    %1192 = vmatpush.msra.mxu0 0.0
    %1193 = vmatpush.msra.mxu0 0.0
    %1194 = vmatpush.msra.mxu0 0.0
    %1195 = vmatpush.msra.mxu0 0.0
    %1196 = vmatpush.msra.mxu0 0.0
    %1197 = vmatpush.msra.mxu0 0.0
    %1198 = vmatpush.msra.mxu0 0.0
    %1199 = vmatpush.msra.mxu0 0.0
    %1200 = vmatpush.msra.mxu0 %v1171
    %1201 = vmatpush.msra.mxu0 %v1169
    %1202 = vmatpush.msra.mxu0 %v1167
    %1203 = vmatpush.msra.mxu0 %v1165
    %1204 = vmatmul.f32.gmra.mxu0 %v1177
    %v1205 = vpop.f32.mrf.mxu0
    %v1206 = vadd.f32 0.0, %v1205
    %1207 = vmatmul.f32.gmra.mxu0 %v1180
    %v1208 = vpop.f32.mrf.mxu0
    %v1209 = vadd.f32 0.0, %v1208
    %1210 = vmatmul.f32.gmra.mxu0 %v1183
    %v1211 = vpop.f32.mrf.mxu0
    %v1212 = vadd.f32 0.0, %v1211
    %1213 = vmatmul.f32.gmra.mxu0 %v1186
    %v1214 = vpop.f32.mrf.mxu0
    %v1215 = vadd.f32 0.0, %v1214
    %1216 = vdwg.mxu0
    %v1217 = vadd.f32 %v1155, %v1206
    %v1218 = vadd.f32 %v1156, %v1209
    %v1219 = vadd.f32 %v1157, %v1212
    %v1220 = vadd.f32 %v1158, %v1215
    %s1221 = scalar_lea.vmem [#allocation2], 480
    %v1222 = vld [vmem:[%s1221] sm:$0xff]
    %v1223 = vld [vmem:[%s1221 + $0x8] sm:$0xff]
    %v1224 = vld [vmem:[%s1221 + $0x10] sm:$0xff]
    %v1225 = vld [vmem:[%s1221 + $0x18] sm:$0xff]
    %1226 = vrot.lane.b32.xlu0 %v296, 113
    %v1227 = vpop.permute.xlu0 %1226
    %1228 = vrot.lane.b32.xlu0 %v299, 113
    %v1229 = vpop.permute.xlu0 %1228
    %1230 = vrot.lane.b32.xlu0 %v302, 113
    %v1231 = vpop.permute.xlu0 %1230
    %1232 = vrot.lane.b32.xlu0 %v305, 113
    %v1233 = vpop.permute.xlu0 %1232
    %v1239 = vsel %vm332, %v1222, 0
    %v1242 = vsel %vm332, %v1223, 0
    %v1245 = vsel %vm332, %v1224, 0
    %v1248 = vsel %vm332, %v1225, 0
    %1250 = vmatpush.msra.mxu0 0.0
    %1251 = vmatpush.msra.mxu0 0.0
    %1252 = vmatpush.msra.mxu0 0.0
    %1253 = vmatpush.msra.mxu0 0.0
    %1254 = vmatpush.msra.mxu0 0.0
    %1255 = vmatpush.msra.mxu0 0.0
    %1256 = vmatpush.msra.mxu0 0.0
    %1257 = vmatpush.msra.mxu0 0.0
    %1258 = vmatpush.msra.mxu0 0.0
    %1259 = vmatpush.msra.mxu0 0.0
    %1260 = vmatpush.msra.mxu0 0.0
    %1261 = vmatpush.msra.mxu0 0.0
    %1262 = vmatpush.msra.mxu0 %v1233
    %1263 = vmatpush.msra.mxu0 %v1231
    %1264 = vmatpush.msra.mxu0 %v1229
    %1265 = vmatpush.msra.mxu0 %v1227
    %1266 = vmatmul.f32.gmra.mxu0 %v1239
    %v1267 = vpop.f32.mrf.mxu0
    %v1268 = vadd.f32 0.0, %v1267
    %1269 = vmatmul.f32.gmra.mxu0 %v1242
    %v1270 = vpop.f32.mrf.mxu0
    %v1271 = vadd.f32 0.0, %v1270
    %1272 = vmatmul.f32.gmra.mxu0 %v1245
    %v1273 = vpop.f32.mrf.mxu0
    %v1274 = vadd.f32 0.0, %v1273
    %1275 = vmatmul.f32.gmra.mxu0 %v1248
    %v1276 = vpop.f32.mrf.mxu0
    %v1277 = vadd.f32 0.0, %v1276
    %1278 = vdwg.mxu0
    %v1279 = vadd.f32 %v1217, %v1268
    %v1280 = vadd.f32 %v1218, %v1271
    %v1281 = vadd.f32 %v1219, %v1274
    %v1282 = vadd.f32 %v1220, %v1277
    %1283 = vset.pattern.permute.xlu0 1
    %1284 = vperm.xlu0 %1283, %v74
    %v1285 = vpop.permute.xlu0 %1284
    %1287 = vset.pattern.permute.xlu0 1
    %1288 = vperm.xlu0 %1287, %v75
    %v1289 = vpop.permute.xlu0 %1288
    %1291 = vset.pattern.permute.xlu0 1
    %1292 = vperm.xlu0 %1291, %v76
    %v1293 = vpop.permute.xlu0 %1292
    %1295 = vset.pattern.permute.xlu0 1
    %1296 = vperm.xlu0 %1295, %v77
    %v1297 = vpop.permute.xlu0 %1296
    %v1299 = vadd.f32 %v1279, %v1285
    %v1300 = vadd.f32 %v1280, %v1289
    %v1301 = vadd.f32 %v1281, %v1293
    %v1302 = vadd.f32 %v1282, %v1297
    %vm1303 = vcmp.gt.f32.partialorder %v1299, 0.0
    %vm1304 = vcmp.gt.f32.partialorder %v1300, 0.0
    %vm1305 = vcmp.gt.f32.partialorder %v1301, 0.0
    %vm1306 = vcmp.gt.f32.partialorder %v1302, 0.0
    %v1307 = vmin.f32 %v1299, 0.0
    %v1308 = vmin.f32 %v1300, 0.0
    %v1309 = vmin.f32 %v1301, 0.0
    %v1310 = vmin.f32 %v1302, 0.0
    %v1311 = vmul.f32 %v1307, 1.442695
    %v1312 = vpow.pop %v1311
    %v1313 = vmul.f32 %v1308, 1.442695
    %v1314 = vpow.pop %v1313
    %v1315 = vmul.f32 %v1309, 1.442695
    %v1316 = vpow.pop %v1315
    %v1317 = vmul.f32 %v1310, 1.442695
    %v1318 = vpow.pop %v1317
    %v1319 = vsub.f32 %v1312, 1.0
    %v1320 = vsub.f32 %v1314, 1.0
    %v1321 = vsub.f32 %v1316, 1.0
    %v1322 = vsub.f32 %v1318, 1.0
    %v1323 = vsel %vm1303, %v1299, %v1319
    %v1324 = vsel %vm1304, %v1300, %v1320
    %v1325 = vsel %vm1305, %v1301, %v1321
    %v1326 = vsel %vm1306, %v1302, %v1322
    %v1327 = vld [vmem:[%s5] sm:$0xff]
    %v1328 = vld [vmem:[%s5 + $0x8] sm:$0xff]
    %v1329 = vld [vmem:[%s5 + $0x10] sm:$0xff]
    %v1330 = vld [vmem:[%s5 + $0x18] sm:$0xff]
    %v1331 = vld [vmem:[%s5 + $0x20] sm:$0x1]
    %vm1332 = vcmask 269312
    %v1334 = vsel %vm1332, %v1323, 0
    %v1337 = vsel %vm1332, %v1324, 0
    %v1340 = vsel %vm1332, %v1325, 0
    %v1343 = vsel %vm1332, %v1326, 0
    %vm1345 = vcmask 1040384
    %v1347 = vsel %vm1345, %v1331, 0
    %1349 = vmatpush.msra.mxu0 0.0
    %1350 = vmatpush.msra.mxu0 0.0
    %1351 = vmatpush.msra.mxu0 0.0
    %1352 = vmatpush.msra.mxu0 0.0
    %1353 = vmatpush.msra.mxu0 0.0
    %1354 = vmatpush.msra.mxu0 0.0
    %1355 = vmatpush.msra.mxu0 0.0
    %1356 = vmatpush.msra.mxu0 0.0
    %1357 = vmatpush.msra.mxu0 0.0
    %1358 = vmatpush.msra.mxu0 0.0
    %1359 = vmatpush.msra.mxu0 0.0
    %1360 = vmatpush.msra.mxu0 %v1347
    %1361 = vmatpush.msra.mxu0 %v1330
    %1362 = vmatpush.msra.mxu0 %v1329
    %1363 = vmatpush.msra.mxu0 %v1328
    %1364 = vmatpush.msra.mxu0 %v1327
    %1365 = vmatmul.f32.gmra.mxu0 %v1334
    %v1366 = vpop.f32.mrf.mxu0
    %v1367 = vadd.f32 0.0, %v1366
    %1368 = vmatmul.f32.gmra.mxu0 %v1337
    %v1369 = vpop.f32.mrf.mxu0
    %v1370 = vadd.f32 0.0, %v1369
    %1371 = vmatmul.f32.gmra.mxu0 %v1340
    %v1372 = vpop.f32.mrf.mxu0
    %v1373 = vadd.f32 0.0, %v1372
    %1374 = vmatmul.f32.gmra.mxu0 %v1343
    %v1375 = vpop.f32.mrf.mxu0
    %v1376 = vadd.f32 0.0, %v1375
    %1377 = vdwg.mxu0
    %1378 = vxpose.xlu0.b32.start [1/16] %v1367, 128
    %1379 = vxpose.xlu0.b32.cont [2/16] %v1370, 128
    %1380 = vxpose.xlu0.b32.cont [3/16] %v1373, 128
    %1381 = vxpose.xlu0.b32.cont [4/16] %v1376, 128
    %1382 = vxpose.xlu0.b32.cont [5/16] 0.0, 128
    %1383 = vxpose.xlu0.b32.cont [6/16] 0.0, 128
    %1384 = vxpose.xlu0.b32.cont [7/16] 0.0, 128
    %1385 = vxpose.xlu0.b32.cont [8/16] 0.0, 128
    %1386 = vxpose.xlu0.b32.cont [9/16] 0.0, 128
    %1387 = vxpose.xlu0.b32.cont [10/16] 0.0, 128
    %1388 = vxpose.xlu0.b32.cont [11/16] 0.0, 128
    %1389 = vxpose.xlu0.b32.cont [12/16] 0.0, 128
    %1390 = vxpose.xlu0.b32.cont [13/16] 0.0, 128
    %1391 = vxpose.xlu0.b32.cont [14/16] 0.0, 128
    %1392 = vxpose.xlu0.b32.cont [15/16] 0.0, 128
    %1393 = vxpose.xlu0.b32.end [16/16] 0.0, 128
    %v1394 = vpop.trf.xlu0
    %v1395 = vpop.trf.xlu0
    %v1396 = vpop.trf.xlu0
    %v1397 = vpop.trf.xlu0
    %v1398 = vpop.trf.xlu0
    %v1399 = vpop.trf.xlu0
    %v1400 = vpop.trf.xlu0
    %v1401 = vpop.trf.xlu0
    %v1402 = vpop.trf.xlu0
    %v1403 = vpop.trf.xlu0
    %v1404 = vpop.trf.xlu0
    %v1405 = vpop.trf.xlu0
    %v1406 = vpop.trf.xlu0
    %v1407 = vpop.trf.xlu0
    %v1408 = vpop.trf.xlu0
    %v1409 = vpop.trf.xlu0
    %vm1410 = vcmask 254976
    %1411 = vst.msk [vmem:[#allocation6] sm:$0x3] %vm1410, %v1394
    %v1412 = vld [vmem:[%s6] sm:$0xff]
    %v1413 = vld [vmem:[%s6 + $0x8] sm:$0xff]
    %v1414 = vld [vmem:[%s6 + $0x10] sm:$0xff]
    %v1415 = vld [vmem:[%s6 + $0x18] sm:$0xff]
    %1417 = vset.pattern.permute.xlu0 0
    %1418 = vperm.xlu0 %1417, %v1367
    %v1419 = vpop.permute.xlu0 %1418
    %1422 = vset.pattern.permute.xlu0 0
    %1423 = vperm.xlu0 %1422, %v1370
    %v1424 = vpop.permute.xlu0 %1423
    %1427 = vset.pattern.permute.xlu0 0
    %1428 = vperm.xlu0 %1427, %v1373
    %v1429 = vpop.permute.xlu0 %1428
    %1432 = vset.pattern.permute.xlu0 0
    %1433 = vperm.xlu0 %1432, %v1376
    %v1434 = vpop.permute.xlu0 %1433
    %v1436 = vmul.f32 %v1419, %v1412
    %v1437 = vmul.f32 %v1424, %v1413
    %v1438 = vmul.f32 %v1429, %v1414
    %v1439 = vmul.f32 %v1434, %v1415
    %1440 = vset.pattern.permute.xlu0 1
    %1441 = vperm.xlu0 %1440, %v1367
    %v1442 = vpop.permute.xlu0 %1441
    %1444 = vset.pattern.permute.xlu0 1
    %1445 = vperm.xlu0 %1444, %v1370
    %v1446 = vpop.permute.xlu0 %1445
    %1448 = vset.pattern.permute.xlu0 1
    %1449 = vperm.xlu0 %1448, %v1373
    %v1450 = vpop.permute.xlu0 %1449
    %1452 = vset.pattern.permute.xlu0 1
    %1453 = vperm.xlu0 %1452, %v1376
    %v1454 = vpop.permute.xlu0 %1453
    %v1456 = vmul.f32 %v1442, %v1412
    %v1457 = vmul.f32 %v1446, %v1413
    %v1458 = vmul.f32 %v1450, %v1414
    %v1459 = vmul.f32 %v1454, %v1415
    %1464 = vrot.lane.b32.xlu0 %v1456, 124
    %v1465 = vpop.permute.xlu0 %1464
    %1466 = vrot.lane.b32.xlu0 %v1457, 124
    %v1467 = vpop.permute.xlu0 %1466
    %1468 = vrot.lane.b32.xlu0 %v1458, 124
    %v1469 = vpop.permute.xlu0 %1468
    %1470 = vrot.lane.b32.xlu0 %v1459, 124
    %v1471 = vpop.permute.xlu0 %1470
    %v1476 = vadd.f32 %v1436, %v1465
    %v1477 = vadd.f32 %v1437, %v1467
    %v1478 = vadd.f32 %v1438, %v1469
    %v1479 = vadd.f32 %v1439, %v1471
    %v1480 = vld [vmem:[%s7] sm:$0x3]
    %v1481 = vld [vmem:[%s8] sm:$0x3]
    %v1483 = vsel %vm332, %v1480, 0
    %1485 = vmatpush.msra.mxu0 0.0
    %1486 = vmatpush.msra.mxu0 0.0
    %1487 = vmatpush.msra.mxu0 0.0
    %1488 = vmatpush.msra.mxu0 0.0
    %1489 = vmatpush.msra.mxu0 0.0
    %1490 = vmatpush.msra.mxu0 0.0
    %1491 = vmatpush.msra.mxu0 0.0
    %1492 = vmatpush.msra.mxu0 0.0
    %1493 = vmatpush.msra.mxu0 0.0
    %1494 = vmatpush.msra.mxu0 0.0
    %1495 = vmatpush.msra.mxu0 0.0
    %1496 = vmatpush.msra.mxu0 0.0
    %1497 = vmatpush.msra.mxu0 %v1479
    %1498 = vmatpush.msra.mxu0 %v1478
    %1499 = vmatpush.msra.mxu0 %v1477
    %1500 = vmatpush.msra.mxu0 %v1476
    %1501 = vmatmul.f32.gmra.mxu0 %v1483
    %v1502 = vpop.f32.mrf.mxu0
    %v1503 = vadd.f32 %v1481, %v1502
    %1504 = vdwg.mxu0
    %vm1505 = vcmask 25600
    %v1506 = vsel %vm1505, %v1503, -inf
    %1507 = vmax.xlane.f32.xlu0 %v1506
    %v1508 = vpop.xlane.xlu0 %1507
    %v1509 = vsub.f32 %v1503, %v1508
    %v1510 = vmul.f32 %v1509, 1.442695
    %v1511 = vpow.pop %v1510
    %v1512 = vsel %vm1505, %v1511, 0.0
    %1513 = vadd.xlane.f32.xlu0 %v1512
    %v1514 = vpop.xlane.xlu0 %1513
    %v1515 = vlog2.pop %v1514
    %v1516 = vmul.f32 %v1515, 0.6931472
    %v1517 = vsub.f32 %v1509, %v1516
    %1518 = vst.msk [vmem:[#allocation5] sm:$0x3] %vm1505, %v1517
    // Predicated region
    $region42: #{tpu_custom_call.1} parent=1 // pred_check
      _
    $region43: #{tpu_custom_call.1} parent=1 // pred_check_branch
      %1520 = sbr.rel (0) target = $region45
    $region44: #{tpu_custom_call.1} parent=1 // pred_region
      %1522 = vsyncadd [#allocation4], 0
      %s1524 = sshll.u32 [#allocation5], 4
      %s1525 = int_to_ptr.vmem [resolvable:$true] %s1524
      %s1526 = sshll.u32 %s9, 4
      %s1527 = int_to_ptr.hbm [resolvable:$true] %s1526
      %1529 = dma.vmem_to_hbm [thread:$0]  %s1525, 32, %s1527, [#allocation4]
    $region45: #{tpu_custom_call.1} parent=1 // pred_fallthru
      _
    // Predicated region
    $region46: #{tpu_custom_call.1} parent=1 // pred_check
      _
    $region47: #{tpu_custom_call.1} parent=1 // pred_check_branch
      %1531 = sbr.rel (0) target = $region49
    $region48: #{tpu_custom_call.1} parent=1 // pred_region
      %1533 = vsyncadd [#allocation7], 0
      %s1535 = sshll.u32 [#allocation6], 4
      %s1536 = int_to_ptr.vmem [resolvable:$true] %s1535
      %s1537 = sshll.u32 %s10, 4
      %s1538 = int_to_ptr.hbm [resolvable:$true] %s1537
      %1540 = dma.vmem_to_hbm [thread:$0]  %s1536, 32, %s1538, [#allocation7]
    $region49: #{tpu_custom_call.1} parent=1 // pred_fallthru
      _
    // Predicated region
    $region50: #{tpu_custom_call.1} parent=1 // pred_check
      _
    $region51: #{tpu_custom_call.1} parent=1 // pred_check_branch
      %1542 = sbr.rel (0) target = $region53
    $region52: #{tpu_custom_call.1} parent=1 // pred_region
      %1544 = dma.done [#allocation4], 32
    $region53: #{tpu_custom_call.1} parent=1 // pred_fallthru
      _
    // Predicated region
    $region54: #{tpu_custom_call.1} parent=1 // pred_check
      _
    $region55: #{tpu_custom_call.1} parent=1 // pred_check_branch
      %1546 = sbr.rel (0) target = $region57
    $region56: #{tpu_custom_call.1} parent=1 // pred_region
      %1548 = dma.done [#allocation7], 32
    $region57: #{tpu_custom_call.1} parent=1 // pred_fallthru
      _
    %1549 = vsyncpa [#allocation3], 1
    %1550 = vsyncpa [#allocation4], 1
    %1551 = vsyncpa [#allocation7], 1

</llo_original>
